<compile_context>
chip_gen: v7x
topology: tpu7x:2x2x1
jax: 0.10.0
libtpu: 0.0.40
codegen_flags: <defaults>
</compile_context>

<pallas_src>
import jax
import jax.numpy as jnp
from jax import lax
from jax.experimental import pallas as pl
from jax.experimental.pallas import tpu as pltpu

EPS = 1e-5  # PyTorch BatchNorm default eps


# ----------------------------- Pallas kernels ------------------------------

def _conv_bn_relu_pool(p_ref, w, b, g, beta):
    """Shared body: conv (im2col matmul, pool-window hoisted) + BN + ReLU + pool.

    p_ref : (4, K, Mp) patches; axis 0 = position inside the 2x2 pool window,
            K = Cin*k*k, Mp = N*Hp*Wp (pooled spatial positions).
    w     : (C, K) conv weight (Cout, Cin*k*k).   b/g/beta : (C, 1).
    Returns (C, Mp) pooled, BN-normalised, ReLU'd activation (f32).
    """
    y0 = jnp.dot(w, p_ref[0], preferred_element_type=jnp.float32) + b
    y1 = jnp.dot(w, p_ref[1], preferred_element_type=jnp.float32) + b
    y2 = jnp.dot(w, p_ref[2], preferred_element_type=jnp.float32) + b
    y3 = jnp.dot(w, p_ref[3], preferred_element_type=jnp.float32) + b

    # BatchNorm statistics over ALL pre-pool positions (N*Ho*Wo = 4*Mp) per
    # channel -> lane-axis reductions; biased variance (PyTorch BN training).
    # One-pass form: the two reductions are independent -> better overlap.
    cnt = 4.0 * y0.shape[-1]
    mean = jnp.sum(y0 + y1 + y2 + y3, axis=-1, keepdims=True) / cnt
    msq = jnp.sum(y0 * y0 + y1 * y1 + y2 * y2 + y3 * y3,
                  axis=-1, keepdims=True) / cnt
    var = msq - mean * mean
    scale = g * lax.rsqrt(var + EPS)
    shift = beta - mean * scale

    # BN affine + ReLU per window position, then 2x2 max-pool = elementwise max.
    z0 = jnp.maximum(y0 * scale + shift, 0.0)
    z1 = jnp.maximum(y1 * scale + shift, 0.0)
    z2 = jnp.maximum(y2 * scale + shift, 0.0)
    z3 = jnp.maximum(y3 * scale + shift, 0.0)
    return jnp.maximum(jnp.maximum(z0, z1), jnp.maximum(z2, z3))


def _conv1_kernel(p_ref, w_ref, b_ref, g_ref, beta_ref, o_ref):
    """conv1 + bn1 + relu + maxpool2x2, output (C, N*Hp*Wp)."""
    o_ref[...] = _conv_bn_relu_pool(p_ref, w_ref[...], b_ref[...],
                                    g_ref[...], beta_ref[...])


def _conv2_fc_head_kernel(p_ref, wc_ref, bc_ref, g2_ref, be2_ref,
                          w1_ref, b1_ref, g3_ref, be3_ref,
                          w2_ref, b2_ref, w3_ref, b3_ref,
                          o_ref, flat_ref):
    """conv2+bn2+relu+pool, in-kernel flatten, fc1+bn3+relu, fc2+relu, fc3."""
    z = _conv_bn_relu_pool(p_ref, wc_ref[...], bc_ref[...],
                           g2_ref[...], be2_ref[...])          # (16, N*25)

    # Flatten to PyTorch order (N, C*h*w) through a VMEM scratch: static
    # (1, 25) lane-slice copies; avoids any in-kernel reshape/transpose
    # relayout and keeps the activation on-chip.
    Np, _ = flat_ref.shape
    C2, M = z.shape
    S = M // Np                                                 # 25 spatials
    for n in range(Np):
        for c in range(C2):
            flat_ref[n:n + 1, c * S:(c + 1) * S] = z[c:c + 1, n * S:(n + 1) * S]

    x = flat_ref[...]                                           # (N, 400)
    h = jnp.dot(x, w1_ref[...], preferred_element_type=jnp.float32) + b1_ref[...]
    nr = float(h.shape[0])
    mu = jnp.sum(h, axis=0, keepdims=True) / nr
    var = jnp.sum(h * h, axis=0, keepdims=True) / nr - mu * mu  # biased var
    h = jnp.maximum(g3_ref[...] * (h - mu) * lax.rsqrt(var + EPS)
                    + be3_ref[...], 0.0)                        # (N, 120)
    h = jnp.maximum(jnp.dot(h, w2_ref[...],
                            preferred_element_type=jnp.float32) + b2_ref[...],
                    0.0)                                        # (N, 84)
    o_ref[...] = jnp.dot(h, w3_ref[...],
                         preferred_element_type=jnp.float32) + b3_ref[...]


# ----------------------------- pallas_call wrappers ------------------------

_CP = pltpu.CompilerParams(dimension_semantics=("arbitrary",))


def _full_specs(shapes):
    # Whole-array single-block specs (block_shape == full array dims).
    return [pl.BlockSpec(tuple(s), lambda i, _n=len(s): (0,) * _n) for s in shapes]


def conv1_stage(p, w, b, g, beta):
    _, K, Mp = p.shape
    C = w.shape[0]
    return pl.pallas_call(
        _conv1_kernel,
        out_shape=jax.ShapeDtypeStruct((C, Mp), jnp.float32),
        grid=(1,),
        in_specs=_full_specs([(4, K, Mp), (C, K), (C, 1), (C, 1), (C, 1)]),
        out_specs=pl.BlockSpec((C, Mp), lambda i: (0, 0)),
        compiler_params=_CP,
    )(p, w, b, g, beta)


def conv2_fc_head(p, params, batch):
    classes = params["fc3_w"].shape[1]
    feat = params["fc1_w"].shape[0]                  # 16*5*5 = 400
    args = (p,
            params["conv2_w"], params["conv2_b"], params["bn2_g"], params["bn2_b"],
            params["fc1_w"], params["fc1_b"], params["bn3_g"], params["bn3_b"],
            params["fc2_w"], params["fc2_b"],
            params["fc3_w"], params["fc3_b"])
    return pl.pallas_call(
        _conv2_fc_head_kernel,
        out_shape=jax.ShapeDtypeStruct((batch, classes), jnp.float32),
        grid=(1,),
        in_specs=_full_specs([a.shape for a in args]),
        out_specs=pl.BlockSpec((batch, classes), lambda i: (0, 0)),
        scratch_shapes=[pltpu.VMEM((batch, feat), jnp.float32)],
        compiler_params=_CP,
    )(*args)


# ----------------------------- glue: im2col (pool-window hoisted) ----------

def im2col_pooled(x, k):
    """x: (N, C, H, W) NCHW.  Returns P: (4, C*k*k, N*Hp*Wp).

    Axis 0 is the position (dh, dw) inside the 2x2 max-pool window, feature
    order is (Cin, kh, kw) — matching conv weight reshape (Cout, Cin*k*k) —
    and the column order is (n, hp, wp)."""
    N, C, H, W = x.shape
    Ho, Wo = H - k + 1, W - k + 1
    Hp, Wp = Ho // 2, Wo // 2
    cols = []
    for kh in range(k):
        for kw in range(k):
            cols.append(x[:, :, kh:kh + Ho, kw:kw + Wo])      # (N, C, Ho, Wo)
    p = jnp.stack(cols, axis=2)                               # (N, C, k*k, Ho, Wo)
    p = p.reshape(N, C, k * k, Hp, 2, Wp, 2)                  # split pool window
    p = p.transpose(4, 6, 1, 2, 0, 3, 5)                      # (dh,dw,C,kk,N,Hp,Wp)
    p = p.reshape(4, C * k * k, N * Hp * Wp)
    return p, Hp, Wp


# ----------------------------- LeNet_bn forward -----------------------------

def init_params(key, classes):
    ks = jax.random.split(key, 5)
    f32 = jnp.float32
    conv1_w = jax.random.normal(ks[0], (6, 3, 5, 5), f32) * 0.1
    conv2_w = jax.random.normal(ks[1], (16, 6, 5, 5), f32) * 0.1
    return {
        # conv weights pre-reshaped to (Cout, Cin*k*k); biases zero.
        "conv1_w": conv1_w.reshape(6, -1), "conv1_b": jnp.zeros((6, 1), f32),
        "conv2_w": conv2_w.reshape(16, -1), "conv2_b": jnp.zeros((16, 1), f32),
        # BN params: gamma=1, beta=0 (as in initialize_weights).
        "bn1_g": jnp.ones((6, 1), f32), "bn1_b": jnp.zeros((6, 1), f32),
        "bn2_g": jnp.ones((16, 1), f32), "bn2_b": jnp.zeros((16, 1), f32),
        "bn3_g": jnp.ones((1, 120), f32), "bn3_b": jnp.zeros((1, 120), f32),
        # Linear weights pre-transposed to (in, out); biases zero.
        "fc1_w": (jax.random.normal(ks[2], (120, 400), f32) * 0.05).T,
        "fc1_b": jnp.zeros((1, 120), f32),
        "fc2_w": (jax.random.normal(ks[3], (84, 120), f32) * 0.05).T,
        "fc2_b": jnp.zeros((1, 84), f32),
        "fc3_w": (jax.random.normal(ks[4], (classes, 84), f32) * 0.05).T,
        "fc3_b": jnp.zeros((1, classes), f32),
    }


def lenet_bn_forward(params, x):
    """x: (N, 3, 32, 32) float32 NCHW (as in PyTorch)."""
    N = x.shape[0]

    # conv1 -> bn1 -> relu -> maxpool2x2  (one fused Pallas kernel)
    p1, hp1, wp1 = im2col_pooled(x, 5)                         # (4, 75, N*196)
    y1 = conv1_stage(p1, params["conv1_w"], params["conv1_b"],
                     params["bn1_g"], params["bn1_b"])         # (6, N*196)
    x2 = y1.reshape(6, N, hp1, wp1).transpose(1, 0, 2, 3)      # (N, 6, 14, 14)

    # conv2 -> bn2 -> relu -> maxpool2x2 -> flatten -> fc1 -> bn3 -> relu
    # -> fc2 -> relu -> fc3   (one fused Pallas kernel)
    p2, _, _ = im2col_pooled(x2, 5)                            # (4, 150, N*25)
    return conv2_fc_head(p2, params, N)                        # (N, classes)


if __name__ == "__main__":
    classes = 10
    key = jax.random.PRNGKey(0)
    kx, kp = jax.random.split(key)
    # LeNet geometry requires 32x32 spatial input (16*5*5 flatten); batch=2.
    x = jax.random.normal(kx, (2, 3, 32, 32), jnp.float32)
    params = init_params(kp, classes)

    fwd = jax.jit(lenet_bn_forward)
    out = jax.block_until_ready(fwd(params, x))
    assert out.shape == (2, classes), out.shape
    print("KERNEL_OK")
</pallas_src>

<mosaic_0001>
module attributes {stable_mosaic.version = 11 : i64} {
  func.func @_conv1_kernel(%arg0: i32, %arg1: memref<4x75x392xf32, #tpu.memory_space<vmem>>, %arg2: memref<6x75xf32, #tpu.memory_space<vmem>>, %arg3: memref<6x1xf32, #tpu.memory_space<vmem>>, %arg4: memref<6x1xf32, #tpu.memory_space<vmem>>, %arg5: memref<6x1xf32, #tpu.memory_space<vmem>>, %arg6: memref<6x392xf32, #tpu.memory_space<vmem>>) attributes {dimension_semantics = [#tpu.dimension_semantics<arbitrary>], iteration_bounds = array<i64: 1>, scalar_prefetch = 0 : i64, scratch_operands = 0 : i64, tpu.core_type = #tpu.core_type<tc>, window_params = [{pipeline_mode = #tpu.pipeline_mode<synchronous>, transform_indices = @transform_0, window_bounds = array<i64: 4, 75, 392>}, {pipeline_mode = #tpu.pipeline_mode<synchronous>, transform_indices = @transform_1, window_bounds = array<i64: 6, 75>}, {pipeline_mode = #tpu.pipeline_mode<synchronous>, transform_indices = @transform_2, window_bounds = array<i64: 6, 1>}, {pipeline_mode = #tpu.pipeline_mode<synchronous>, transform_indices = @transform_3, window_bounds = array<i64: 6, 1>}, {pipeline_mode = #tpu.pipeline_mode<synchronous>, transform_indices = @transform_4, window_bounds = array<i64: 6, 1>}, {pipeline_mode = #tpu.pipeline_mode<synchronous>, transform_indices = @transform_5, window_bounds = array<i64: 6, 392>}]} {
    %c0 = arith.constant 0 : index
    %c0_0 = arith.constant 0 : index
    %0 = vector.load %arg2[%c0, %c0_0] : memref<6x75xf32, #tpu.memory_space<vmem>>, vector<6x75xf32>
    %c0_1 = arith.constant 0 : index
    %c0_2 = arith.constant 0 : index
    %1 = vector.load %arg3[%c0_1, %c0_2] : memref<6x1xf32, #tpu.memory_space<vmem>>, vector<6x1xf32>
    %c0_3 = arith.constant 0 : index
    %c0_4 = arith.constant 0 : index
    %2 = vector.load %arg4[%c0_3, %c0_4] : memref<6x1xf32, #tpu.memory_space<vmem>>, vector<6x1xf32>
    %c0_5 = arith.constant 0 : index
    %c0_6 = arith.constant 0 : index
    %3 = vector.load %arg5[%c0_5, %c0_6] : memref<6x1xf32, #tpu.memory_space<vmem>>, vector<6x1xf32>
    %c0_7 = arith.constant 0 : index
    %c0_8 = arith.constant 0 : index
    %c0_9 = arith.constant 0 : index
    %4 = vector.load %arg1[%c0_7, %c0_8, %c0_9] : memref<4x75x392xf32, #tpu.memory_space<vmem>>, vector<1x75x392xf32>
    %5 = vector.shape_cast %4 : vector<1x75x392xf32> to vector<75x392xf32>
    %cst = arith.constant dense<0.000000e+00> : vector<6x392xf32>
    %6 = tpu.matmul %0, %5, %cst {dimension_numbers = #tpu.dot_dimension_numbers<[1], [0], [0], [1], [0, 0, 1, 1], [], []>} : vector<6x75xf32>, vector<75x392xf32>, vector<6x392xf32> -> vector<6x392xf32>
    %7 = vector.broadcast %1 : vector<6x1xf32> to vector<6x392xf32>
    %8 = arith.addf %6, %7 : vector<6x392xf32>
    %c1 = arith.constant 1 : index
    %c0_10 = arith.constant 0 : index
    %c0_11 = arith.constant 0 : index
    %9 = vector.load %arg1[%c1, %c0_10, %c0_11] : memref<4x75x392xf32, #tpu.memory_space<vmem>>, vector<1x75x392xf32>
    %10 = vector.shape_cast %9 : vector<1x75x392xf32> to vector<75x392xf32>
    %cst_12 = arith.constant dense<0.000000e+00> : vector<6x392xf32>
    %11 = tpu.matmul %0, %10, %cst_12 {dimension_numbers = #tpu.dot_dimension_numbers<[1], [0], [0], [1], [0, 0, 1, 1], [], []>} : vector<6x75xf32>, vector<75x392xf32>, vector<6x392xf32> -> vector<6x392xf32>
    %12 = vector.broadcast %1 : vector<6x1xf32> to vector<6x392xf32>
    %13 = arith.addf %11, %12 : vector<6x392xf32>
    %c2 = arith.constant 2 : index
    %c0_13 = arith.constant 0 : index
    %c0_14 = arith.constant 0 : index
    %14 = vector.load %arg1[%c2, %c0_13, %c0_14] : memref<4x75x392xf32, #tpu.memory_space<vmem>>, vector<1x75x392xf32>
    %15 = vector.shape_cast %14 : vector<1x75x392xf32> to vector<75x392xf32>
    %cst_15 = arith.constant dense<0.000000e+00> : vector<6x392xf32>
    %16 = tpu.matmul %0, %15, %cst_15 {dimension_numbers = #tpu.dot_dimension_numbers<[1], [0], [0], [1], [0, 0, 1, 1], [], []>} : vector<6x75xf32>, vector<75x392xf32>, vector<6x392xf32> -> vector<6x392xf32>
    %17 = vector.broadcast %1 : vector<6x1xf32> to vector<6x392xf32>
    %18 = arith.addf %16, %17 : vector<6x392xf32>
    %c3 = arith.constant 3 : index
    %c0_16 = arith.constant 0 : index
    %c0_17 = arith.constant 0 : index
    %19 = vector.load %arg1[%c3, %c0_16, %c0_17] : memref<4x75x392xf32, #tpu.memory_space<vmem>>, vector<1x75x392xf32>
    %20 = vector.shape_cast %19 : vector<1x75x392xf32> to vector<75x392xf32>
    %cst_18 = arith.constant dense<0.000000e+00> : vector<6x392xf32>
    %21 = tpu.matmul %0, %20, %cst_18 {dimension_numbers = #tpu.dot_dimension_numbers<[1], [0], [0], [1], [0, 0, 1, 1], [], []>} : vector<6x75xf32>, vector<75x392xf32>, vector<6x392xf32> -> vector<6x392xf32>
    %22 = vector.broadcast %1 : vector<6x1xf32> to vector<6x392xf32>
    %23 = arith.addf %21, %22 : vector<6x392xf32>
    %24 = arith.addf %8, %13 : vector<6x392xf32>
    %25 = arith.addf %24, %18 : vector<6x392xf32>
    %26 = arith.addf %25, %23 : vector<6x392xf32>
    %cst_19 = arith.constant dense<0.000000e+00> : vector<6xf32>
    %27 = vector.multi_reduction <add>, %26, %cst_19 [1] : vector<6x392xf32> to vector<6xf32>
    %28 = vector.shape_cast %27 : vector<6xf32> to vector<6x1xf32>
    %cst_20 = arith.constant 1.568000e+03 : f32
    %29 = vector.broadcast %cst_20 : f32 to vector<6x1xf32>
    %30 = arith.divf %28, %29 : vector<6x1xf32>
    %31 = arith.mulf %8, %8 : vector<6x392xf32>
    %32 = arith.mulf %13, %13 : vector<6x392xf32>
    %33 = arith.addf %31, %32 : vector<6x392xf32>
    %34 = arith.mulf %18, %18 : vector<6x392xf32>
    %35 = arith.addf %33, %34 : vector<6x392xf32>
    %36 = arith.mulf %23, %23 : vector<6x392xf32>
    %37 = arith.addf %35, %36 : vector<6x392xf32>
    %cst_21 = arith.constant dense<0.000000e+00> : vector<6xf32>
    %38 = vector.multi_reduction <add>, %37, %cst_21 [1] : vector<6x392xf32> to vector<6xf32>
    %39 = vector.shape_cast %38 : vector<6xf32> to vector<6x1xf32>
    %cst_22 = arith.constant 1.568000e+03 : f32
    %40 = vector.broadcast %cst_22 : f32 to vector<6x1xf32>
    %41 = arith.divf %39, %40 : vector<6x1xf32>
    %42 = arith.mulf %30, %30 : vector<6x1xf32>
    %43 = arith.subf %41, %42 : vector<6x1xf32>
    %cst_23 = arith.constant 9.99999974E-6 : f32
    %44 = vector.broadcast %cst_23 : f32 to vector<6x1xf32>
    %45 = arith.addf %43, %44 : vector<6x1xf32>
    %46 = math.rsqrt %45 : vector<6x1xf32>
    %47 = arith.mulf %2, %46 : vector<6x1xf32>
    %48 = arith.mulf %30, %47 : vector<6x1xf32>
    %49 = arith.subf %3, %48 : vector<6x1xf32>
    %50 = vector.broadcast %47 : vector<6x1xf32> to vector<6x392xf32>
    %51 = arith.mulf %8, %50 : vector<6x392xf32>
    %52 = vector.broadcast %49 : vector<6x1xf32> to vector<6x392xf32>
    %53 = arith.addf %51, %52 : vector<6x392xf32>
    %cst_24 = arith.constant 0.000000e+00 : f32
    %54 = vector.broadcast %cst_24 : f32 to vector<6x392xf32>
    %55 = arith.maximumf %53, %54 : vector<6x392xf32>
    %56 = vector.broadcast %47 : vector<6x1xf32> to vector<6x392xf32>
    %57 = arith.mulf %13, %56 : vector<6x392xf32>
    %58 = vector.broadcast %49 : vector<6x1xf32> to vector<6x392xf32>
    %59 = arith.addf %57, %58 : vector<6x392xf32>
    %cst_25 = arith.constant 0.000000e+00 : f32
    %60 = vector.broadcast %cst_25 : f32 to vector<6x392xf32>
    %61 = arith.maximumf %59, %60 : vector<6x392xf32>
    %62 = vector.broadcast %47 : vector<6x1xf32> to vector<6x392xf32>
    %63 = arith.mulf %18, %62 : vector<6x392xf32>
    %64 = vector.broadcast %49 : vector<6x1xf32> to vector<6x392xf32>
    %65 = arith.addf %63, %64 : vector<6x392xf32>
    %cst_26 = arith.constant 0.000000e+00 : f32
    %66 = vector.broadcast %cst_26 : f32 to vector<6x392xf32>
    %67 = arith.maximumf %65, %66 : vector<6x392xf32>
    %68 = vector.broadcast %47 : vector<6x1xf32> to vector<6x392xf32>
    %69 = arith.mulf %23, %68 : vector<6x392xf32>
    %70 = vector.broadcast %49 : vector<6x1xf32> to vector<6x392xf32>
    %71 = arith.addf %69, %70 : vector<6x392xf32>
    %cst_27 = arith.constant 0.000000e+00 : f32
    %72 = vector.broadcast %cst_27 : f32 to vector<6x392xf32>
    %73 = arith.maximumf %71, %72 : vector<6x392xf32>
    %74 = arith.maximumf %55, %61 : vector<6x392xf32>
    %75 = arith.maximumf %67, %73 : vector<6x392xf32>
    %76 = arith.maximumf %74, %75 : vector<6x392xf32>
    %c0_28 = arith.constant 0 : index
    %c0_29 = arith.constant 0 : index
    %77 = vector.load %arg6[%c0_28, %c0_29] : memref<6x392xf32, #tpu.memory_space<vmem>>, vector<6x392xf32>
    tpu.vector_store %arg6[%c0_28, %c0_29], %76 {strides = array<i32>} : memref<6x392xf32, #tpu.memory_space<vmem>>, vector<6x392xf32>,
    return
  }
  func.func @transform_0(%arg0: i32) -> (i32, i32, i32) {
    %c0_i32 = arith.constant 0 : i32
    %c0_i32_0 = arith.constant 0 : i32
    %c0_i32_1 = arith.constant 0 : i32
    %c0_i32_2 = arith.constant 0 : i32
    return %c0_i32, %c0_i32_0, %c0_i32_1 : i32, i32, i32
  }
  func.func @transform_1(%arg0: i32) -> (i32, i32) {
    %c0_i32 = arith.constant 0 : i32
    %c0_i32_0 = arith.constant 0 : i32
    %c0_i32_1 = arith.constant 0 : i32
    return %c0_i32, %c0_i32_0 : i32, i32
  }
  func.func @transform_2(%arg0: i32) -> (i32, i32) {
    %c0_i32 = arith.constant 0 : i32
    %c0_i32_0 = arith.constant 0 : i32
    %c0_i32_1 = arith.constant 0 : i32
    return %c0_i32, %c0_i32_0 : i32, i32
  }
  func.func @transform_3(%arg0: i32) -> (i32, i32) {
    %c0_i32 = arith.constant 0 : i32
    %c0_i32_0 = arith.constant 0 : i32
    %c0_i32_1 = arith.constant 0 : i32
    return %c0_i32, %c0_i32_0 : i32, i32
  }
  func.func @transform_4(%arg0: i32) -> (i32, i32) {
    %c0_i32 = arith.constant 0 : i32
    %c0_i32_0 = arith.constant 0 : i32
    %c0_i32_1 = arith.constant 0 : i32
    return %c0_i32, %c0_i32_0 : i32, i32
  }
  func.func @transform_5(%arg0: i32) -> (i32, i32) {
    %c0_i32 = arith.constant 0 : i32
    %c0_i32_0 = arith.constant 0 : i32
    %c0_i32_1 = arith.constant 0 : i32
    return %c0_i32, %c0_i32_0 : i32, i32
  }
}

module attributes {stable_mosaic.version = 11 : i64} {
  func.func @_conv2_fc_head_kernel(%arg0: i32, %arg1: memref<4x150x50xf32, #tpu.memory_space<vmem>>, %arg2: memref<16x150xf32, #tpu.memory_space<vmem>>, %arg3: memref<16x1xf32, #tpu.memory_space<vmem>>, %arg4: memref<16x1xf32, #tpu.memory_space<vmem>>, %arg5: memref<16x1xf32, #tpu.memory_space<vmem>>, %arg6: memref<400x120xf32, #tpu.memory_space<vmem>>, %arg7: memref<1x120xf32, #tpu.memory_space<vmem>>, %arg8: memref<1x120xf32, #tpu.memory_space<vmem>>, %arg9: memref<1x120xf32, #tpu.memory_space<vmem>>, %arg10: memref<120x84xf32, #tpu.memory_space<vmem>>, %arg11: memref<1x84xf32, #tpu.memory_space<vmem>>, %arg12: memref<84x10xf32, #tpu.memory_space<vmem>>, %arg13: memref<1x10xf32, #tpu.memory_space<vmem>>, %arg14: memref<2x10xf32, #tpu.memory_space<vmem>>, %arg15: memref<2x400xf32, #tpu.memory_space<vmem>>) attributes {dimension_semantics = [#tpu.dimension_semantics<arbitrary>], iteration_bounds = array<i64: 1>, scalar_prefetch = 0 : i64, scratch_operands = 1 : i64, tpu.core_type = #tpu.core_type<tc>, window_params = [{pipeline_mode = #tpu.pipeline_mode<synchronous>, transform_indices = @transform_0, window_bounds = array<i64: 4, 150, 50>}, {pipeline_mode = #tpu.pipeline_mode<synchronous>, transform_indices = @transform_1, window_bounds = array<i64: 16, 150>}, {pipeline_mode = #tpu.pipeline_mode<synchronous>, transform_indices = @transform_2, window_bounds = array<i64: 16, 1>}, {pipeline_mode = #tpu.pipeline_mode<synchronous>, transform_indices = @transform_3, window_bounds = array<i64: 16, 1>}, {pipeline_mode = #tpu.pipeline_mode<synchronous>, transform_indices = @transform_4, window_bounds = array<i64: 16, 1>}, {pipeline_mode = #tpu.pipeline_mode<synchronous>, transform_indices = @transform_5, window_bounds = array<i64: 400, 120>}, {pipeline_mode = #tpu.pipeline_mode<synchronous>, transform_indices = @transform_6, window_bounds = array<i64: 1, 120>}, {pipeline_mode = #tpu.pipeline_mode<synchronous>, transform_indices = @transform_7, window_bounds = array<i64: 1, 120>}, {pipeline_mode = #tpu.pipeline_mode<synchronous>, transform_indices = @transform_8, window_bounds = array<i64: 1, 120>}, {pipeline_mode = #tpu.pipeline_mode<synchronous>, transform_indices = @transform_9, window_bounds = array<i64: 120, 84>}, {pipeline_mode = #tpu.pipeline_mode<synchronous>, transform_indices = @transform_10, window_bounds = array<i64: 1, 84>}, {pipeline_mode = #tpu.pipeline_mode<synchronous>, transform_indices = @transform_11, window_bounds = array<i64: 84, 10>}, {pipeline_mode = #tpu.pipeline_mode<synchronous>, transform_indices = @transform_12, window_bounds = array<i64: 1, 10>}, {pipeline_mode = #tpu.pipeline_mode<synchronous>, transform_indices = @transform_13, window_bounds = array<i64: 2, 10>}]} {
    %c0 = arith.constant 0 : index
    %c0_0 = arith.constant 0 : index
    %0 = vector.load %arg2[%c0, %c0_0] : memref<16x150xf32, #tpu.memory_space<vmem>>, vector<16x150xf32>
    %c0_1 = arith.constant 0 : index
    %c0_2 = arith.constant 0 : index
    %1 = vector.load %arg3[%c0_1, %c0_2] : memref<16x1xf32, #tpu.memory_space<vmem>>, vector<16x1xf32>
    %c0_3 = arith.constant 0 : index
    %c0_4 = arith.constant 0 : index
    %2 = vector.load %arg4[%c0_3, %c0_4] : memref<16x1xf32, #tpu.memory_space<vmem>>, vector<16x1xf32>
    %c0_5 = arith.constant 0 : index
    %c0_6 = arith.constant 0 : index
    %3 = vector.load %arg5[%c0_5, %c0_6] : memref<16x1xf32, #tpu.memory_space<vmem>>, vector<16x1xf32>
    %c0_7 = arith.constant 0 : index
    %c0_8 = arith.constant 0 : index
    %c0_9 = arith.constant 0 : index
    %4 = vector.load %arg1[%c0_7, %c0_8, %c0_9] : memref<4x150x50xf32, #tpu.memory_space<vmem>>, vector<1x150x50xf32>
    %5 = vector.shape_cast %4 : vector<1x150x50xf32> to vector<150x50xf32>
    %cst = arith.constant dense<0.000000e+00> : vector<16x50xf32>
    %6 = tpu.matmul %0, %5, %cst {dimension_numbers = #tpu.dot_dimension_numbers<[1], [0], [0], [1], [0, 0, 1, 1], [], []>} : vector<16x150xf32>, vector<150x50xf32>, vector<16x50xf32> -> vector<16x50xf32>
    %7 = vector.broadcast %1 : vector<16x1xf32> to vector<16x50xf32>
    %8 = arith.addf %6, %7 : vector<16x50xf32>
    %c1 = arith.constant 1 : index
    %c0_10 = arith.constant 0 : index
    %c0_11 = arith.constant 0 : index
    %9 = vector.load %arg1[%c1, %c0_10, %c0_11] : memref<4x150x50xf32, #tpu.memory_space<vmem>>, vector<1x150x50xf32>
    %10 = vector.shape_cast %9 : vector<1x150x50xf32> to vector<150x50xf32>
    %cst_12 = arith.constant dense<0.000000e+00> : vector<16x50xf32>
    %11 = tpu.matmul %0, %10, %cst_12 {dimension_numbers = #tpu.dot_dimension_numbers<[1], [0], [0], [1], [0, 0, 1, 1], [], []>} : vector<16x150xf32>, vector<150x50xf32>, vector<16x50xf32> -> vector<16x50xf32>
    %12 = vector.broadcast %1 : vector<16x1xf32> to vector<16x50xf32>
    %13 = arith.addf %11, %12 : vector<16x50xf32>
    %c2 = arith.constant 2 : index
    %c0_13 = arith.constant 0 : index
    %c0_14 = arith.constant 0 : index
    %14 = vector.load %arg1[%c2, %c0_13, %c0_14] : memref<4x150x50xf32, #tpu.memory_space<vmem>>, vector<1x150x50xf32>
    %15 = vector.shape_cast %14 : vector<1x150x50xf32> to vector<150x50xf32>
    %cst_15 = arith.constant dense<0.000000e+00> : vector<16x50xf32>
    %16 = tpu.matmul %0, %15, %cst_15 {dimension_numbers = #tpu.dot_dimension_numbers<[1], [0], [0], [1], [0, 0, 1, 1], [], []>} : vector<16x150xf32>, vector<150x50xf32>, vector<16x50xf32> -> vector<16x50xf32>
    %17 = vector.broadcast %1 : vector<16x1xf32> to vector<16x50xf32>
    %18 = arith.addf %16, %17 : vector<16x50xf32>
    %c3 = arith.constant 3 : index
    %c0_16 = arith.constant 0 : index
    %c0_17 = arith.constant 0 : index
    %19 = vector.load %arg1[%c3, %c0_16, %c0_17] : memref<4x150x50xf32, #tpu.memory_space<vmem>>, vector<1x150x50xf32>
    %20 = vector.shape_cast %19 : vector<1x150x50xf32> to vector<150x50xf32>
    %cst_18 = arith.constant dense<0.000000e+00> : vector<16x50xf32>
    %21 = tpu.matmul %0, %20, %cst_18 {dimension_numbers = #tpu.dot_dimension_numbers<[1], [0], [0], [1], [0, 0, 1, 1], [], []>} : vector<16x150xf32>, vector<150x50xf32>, vector<16x50xf32> -> vector<16x50xf32>
    %22 = vector.broadcast %1 : vector<16x1xf32> to vector<16x50xf32>
    %23 = arith.addf %21, %22 : vector<16x50xf32>
    %24 = arith.addf %8, %13 : vector<16x50xf32>
    %25 = arith.addf %24, %18 : vector<16x50xf32>
    %26 = arith.addf %25, %23 : vector<16x50xf32>
    %cst_19 = arith.constant dense<0.000000e+00> : vector<16xf32>
    %27 = vector.multi_reduction <add>, %26, %cst_19 [1] : vector<16x50xf32> to vector<16xf32>
    %28 = vector.shape_cast %27 : vector<16xf32> to vector<16x1xf32>
    %cst_20 = arith.constant 2.000000e+02 : f32
    %29 = vector.broadcast %cst_20 : f32 to vector<16x1xf32>
    %30 = arith.divf %28, %29 : vector<16x1xf32>
    %31 = arith.mulf %8, %8 : vector<16x50xf32>
    %32 = arith.mulf %13, %13 : vector<16x50xf32>
    %33 = arith.addf %31, %32 : vector<16x50xf32>
    %34 = arith.mulf %18, %18 : vector<16x50xf32>
    %35 = arith.addf %33, %34 : vector<16x50xf32>
    %36 = arith.mulf %23, %23 : vector<16x50xf32>
    %37 = arith.addf %35, %36 : vector<16x50xf32>
    %cst_21 = arith.constant dense<0.000000e+00> : vector<16xf32>
    %38 = vector.multi_reduction <add>, %37, %cst_21 [1] : vector<16x50xf32> to vector<16xf32>
    %39 = vector.shape_cast %38 : vector<16xf32> to vector<16x1xf32>
    %cst_22 = arith.constant 2.000000e+02 : f32
    %40 = vector.broadcast %cst_22 : f32 to vector<16x1xf32>
    %41 = arith.divf %39, %40 : vector<16x1xf32>
    %42 = arith.mulf %30, %30 : vector<16x1xf32>
    %43 = arith.subf %41, %42 : vector<16x1xf32>
    %cst_23 = arith.constant 9.99999974E-6 : f32
    %44 = vector.broadcast %cst_23 : f32 to vector<16x1xf32>
    %45 = arith.addf %43, %44 : vector<16x1xf32>
    %46 = math.rsqrt %45 : vector<16x1xf32>
    %47 = arith.mulf %2, %46 : vector<16x1xf32>
    %48 = arith.mulf %30, %47 : vector<16x1xf32>
    %49 = arith.subf %3, %48 : vector<16x1xf32>
    %50 = vector.broadcast %47 : vector<16x1xf32> to vector<16x50xf32>
    %51 = arith.mulf %8, %50 : vector<16x50xf32>
    %52 = vector.broadcast %49 : vector<16x1xf32> to vector<16x50xf32>
    %53 = arith.addf %51, %52 : vector<16x50xf32>
    %cst_24 = arith.constant 0.000000e+00 : f32
    %54 = vector.broadcast %cst_24 : f32 to vector<16x50xf32>
    %55 = arith.maximumf %53, %54 : vector<16x50xf32>
    %56 = vector.broadcast %47 : vector<16x1xf32> to vector<16x50xf32>
    %57 = arith.mulf %13, %56 : vector<16x50xf32>
    %58 = vector.broadcast %49 : vector<16x1xf32> to vector<16x50xf32>
    %59 = arith.addf %57, %58 : vector<16x50xf32>
    %cst_25 = arith.constant 0.000000e+00 : f32
    %60 = vector.broadcast %cst_25 : f32 to vector<16x50xf32>
    %61 = arith.maximumf %59, %60 : vector<16x50xf32>
    %62 = vector.broadcast %47 : vector<16x1xf32> to vector<16x50xf32>
    %63 = arith.mulf %18, %62 : vector<16x50xf32>
    %64 = vector.broadcast %49 : vector<16x1xf32> to vector<16x50xf32>
    %65 = arith.addf %63, %64 : vector<16x50xf32>
    %cst_26 = arith.constant 0.000000e+00 : f32
    %66 = vector.broadcast %cst_26 : f32 to vector<16x50xf32>
    %67 = arith.maximumf %65, %66 : vector<16x50xf32>
    %68 = vector.broadcast %47 : vector<16x1xf32> to vector<16x50xf32>
    %69 = arith.mulf %23, %68 : vector<16x50xf32>
    %70 = vector.broadcast %49 : vector<16x1xf32> to vector<16x50xf32>
    %71 = arith.addf %69, %70 : vector<16x50xf32>
    %cst_27 = arith.constant 0.000000e+00 : f32
    %72 = vector.broadcast %cst_27 : f32 to vector<16x50xf32>
    %73 = arith.maximumf %71, %72 : vector<16x50xf32>
    %74 = arith.maximumf %55, %61 : vector<16x50xf32>
    %75 = arith.maximumf %67, %73 : vector<16x50xf32>
    %76 = arith.maximumf %74, %75 : vector<16x50xf32>
    %77 = vector.extract_strided_slice %76 {offsets = [0, 0], sizes = [1, 25], strides = [1, 1]} : vector<16x50xf32> to vector<1x25xf32>
    %c0_28 = arith.constant 0 : index
    %c0_29 = arith.constant 0 : index
    %78 = vector.load %arg15[%c0_28, %c0_29] : memref<2x400xf32, #tpu.memory_space<vmem>>, vector<1x25xf32>
    tpu.vector_store %arg15[%c0_28, %c0_29], %77 {strides = array<i32>} : memref<2x400xf32, #tpu.memory_space<vmem>>, vector<1x25xf32>,
    %79 = vector.extract_strided_slice %76 {offsets = [1, 0], sizes = [1, 25], strides = [1, 1]} : vector<16x50xf32> to vector<1x25xf32>
    %c0_30 = arith.constant 0 : index
    %c25 = arith.constant 25 : index
    %80 = vector.load %arg15[%c0_30, %c25] : memref<2x400xf32, #tpu.memory_space<vmem>>, vector<1x25xf32>
    tpu.vector_store %arg15[%c0_30, %c25], %79 {strides = array<i32>} : memref<2x400xf32, #tpu.memory_space<vmem>>, vector<1x25xf32>,
    %81 = vector.extract_strided_slice %76 {offsets = [2, 0], sizes = [1, 25], strides = [1, 1]} : vector<16x50xf32> to vector<1x25xf32>
    %c0_31 = arith.constant 0 : index
    %c50 = arith.constant 50 : index
    %82 = vector.load %arg15[%c0_31, %c50] : memref<2x400xf32, #tpu.memory_space<vmem>>, vector<1x25xf32>
    tpu.vector_store %arg15[%c0_31, %c50], %81 {strides = array<i32>} : memref<2x400xf32, #tpu.memory_space<vmem>>, vector<1x25xf32>,
    %83 = vector.extract_strided_slice %76 {offsets = [3, 0], sizes = [1, 25], strides = [1, 1]} : vector<16x50xf32> to vector<1x25xf32>
    %c0_32 = arith.constant 0 : index
    %c75 = arith.constant 75 : index
    %84 = vector.load %arg15[%c0_32, %c75] : memref<2x400xf32, #tpu.memory_space<vmem>>, vector<1x25xf32>
    tpu.vector_store %arg15[%c0_32, %c75], %83 {strides = array<i32>} : memref<2x400xf32, #tpu.memory_space<vmem>>, vector<1x25xf32>,
    %85 = vector.extract_strided_slice %76 {offsets = [4, 0], sizes = [1, 25], strides = [1, 1]} : vector<16x50xf32> to vector<1x25xf32>
    %c0_33 = arith.constant 0 : index
    %c100 = arith.constant 100 : index
    %86 = vector.load %arg15[%c0_33, %c100] : memref<2x400xf32, #tpu.memory_space<vmem>>, vector<1x25xf32>
    tpu.vector_store %arg15[%c0_33, %c100], %85 {strides = array<i32>} : memref<2x400xf32, #tpu.memory_space<vmem>>, vector<1x25xf32>,
    %87 = vector.extract_strided_slice %76 {offsets = [5, 0], sizes = [1, 25], strides = [1, 1]} : vector<16x50xf32> to vector<1x25xf32>
    %c0_34 = arith.constant 0 : index
    %c125 = arith.constant 125 : index
    %88 = vector.load %arg15[%c0_34, %c125] : memref<2x400xf32, #tpu.memory_space<vmem>>, vector<1x25xf32>
    tpu.vector_store %arg15[%c0_34, %c125], %87 {strides = array<i32>} : memref<2x400xf32, #tpu.memory_space<vmem>>, vector<1x25xf32>,
    %89 = vector.extract_strided_slice %76 {offsets = [6, 0], sizes = [1, 25], strides = [1, 1]} : vector<16x50xf32> to vector<1x25xf32>
    %c0_35 = arith.constant 0 : index
    %c150 = arith.constant 150 : index
    %90 = vector.load %arg15[%c0_35, %c150] : memref<2x400xf32, #tpu.memory_space<vmem>>, vector<1x25xf32>
    tpu.vector_store %arg15[%c0_35, %c150], %89 {strides = array<i32>} : memref<2x400xf32, #tpu.memory_space<vmem>>, vector<1x25xf32>,
    %91 = vector.extract_strided_slice %76 {offsets = [7, 0], sizes = [1, 25], strides = [1, 1]} : vector<16x50xf32> to vector<1x25xf32>
    %c0_36 = arith.constant 0 : index
    %c175 = arith.constant 175 : index
    %92 = vector.load %arg15[%c0_36, %c175] : memref<2x400xf32, #tpu.memory_space<vmem>>, vector<1x25xf32>
    tpu.vector_store %arg15[%c0_36, %c175], %91 {strides = array<i32>} : memref<2x400xf32, #tpu.memory_space<vmem>>, vector<1x25xf32>,
    %93 = vector.extract_strided_slice %76 {offsets = [8, 0], sizes = [1, 25], strides = [1, 1]} : vector<16x50xf32> to vector<1x25xf32>
    %c0_37 = arith.constant 0 : index
    %c200 = arith.constant 200 : index
    %94 = vector.load %arg15[%c0_37, %c200] : memref<2x400xf32, #tpu.memory_space<vmem>>, vector<1x25xf32>
    tpu.vector_store %arg15[%c0_37, %c200], %93 {strides = array<i32>} : memref<2x400xf32, #tpu.memory_space<vmem>>, vector<1x25xf32>,
    %95 = vector.extract_strided_slice %76 {offsets = [9, 0], sizes = [1, 25], strides = [1, 1]} : vector<16x50xf32> to vector<1x25xf32>
    %c0_38 = arith.constant 0 : index
    %c225 = arith.constant 225 : index
    %96 = vector.load %arg15[%c0_38, %c225] : memref<2x400xf32, #tpu.memory_space<vmem>>, vector<1x25xf32>
    tpu.vector_store %arg15[%c0_38, %c225], %95 {strides = array<i32>} : memref<2x400xf32, #tpu.memory_space<vmem>>, vector<1x25xf32>,
    %97 = vector.extract_strided_slice %76 {offsets = [10, 0], sizes = [1, 25], strides = [1, 1]} : vector<16x50xf32> to vector<1x25xf32>
    %c0_39 = arith.constant 0 : index
    %c250 = arith.constant 250 : index
    %98 = vector.load %arg15[%c0_39, %c250] : memref<2x400xf32, #tpu.memory_space<vmem>>, vector<1x25xf32>
    tpu.vector_store %arg15[%c0_39, %c250], %97 {strides = array<i32>} : memref<2x400xf32, #tpu.memory_space<vmem>>, vector<1x25xf32>,
    %99 = vector.extract_strided_slice %76 {offsets = [11, 0], sizes = [1, 25], strides = [1, 1]} : vector<16x50xf32> to vector<1x25xf32>
    %c0_40 = arith.constant 0 : index
    %c275 = arith.constant 275 : index
    %100 = vector.load %arg15[%c0_40, %c275] : memref<2x400xf32, #tpu.memory_space<vmem>>, vector<1x25xf32>
    tpu.vector_store %arg15[%c0_40, %c275], %99 {strides = array<i32>} : memref<2x400xf32, #tpu.memory_space<vmem>>, vector<1x25xf32>,
    %101 = vector.extract_strided_slice %76 {offsets = [12, 0], sizes = [1, 25], strides = [1, 1]} : vector<16x50xf32> to vector<1x25xf32>
    %c0_41 = arith.constant 0 : index
    %c300 = arith.constant 300 : index
    %102 = vector.load %arg15[%c0_41, %c300] : memref<2x400xf32, #tpu.memory_space<vmem>>, vector<1x25xf32>
    tpu.vector_store %arg15[%c0_41, %c300], %101 {strides = array<i32>} : memref<2x400xf32, #tpu.memory_space<vmem>>, vector<1x25xf32>,
    %103 = vector.extract_strided_slice %76 {offsets = [13, 0], sizes = [1, 25], strides = [1, 1]} : vector<16x50xf32> to vector<1x25xf32>
    %c0_42 = arith.constant 0 : index
    %c325 = arith.constant 325 : index
    %104 = vector.load %arg15[%c0_42, %c325] : memref<2x400xf32, #tpu.memory_space<vmem>>, vector<1x25xf32>
    tpu.vector_store %arg15[%c0_42, %c325], %103 {strides = array<i32>} : memref<2x400xf32, #tpu.memory_space<vmem>>, vector<1x25xf32>,
    %105 = vector.extract_strided_slice %76 {offsets = [14, 0], sizes = [1, 25], strides = [1, 1]} : vector<16x50xf32> to vector<1x25xf32>
    %c0_43 = arith.constant 0 : index
    %c350 = arith.constant 350 : index
    %106 = vector.load %arg15[%c0_43, %c350] : memref<2x400xf32, #tpu.memory_space<vmem>>, vector<1x25xf32>
    tpu.vector_store %arg15[%c0_43, %c350], %105 {strides = array<i32>} : memref<2x400xf32, #tpu.memory_space<vmem>>, vector<1x25xf32>,
    %107 = vector.extract_strided_slice %76 {offsets = [15, 0], sizes = [1, 25], strides = [1, 1]} : vector<16x50xf32> to vector<1x25xf32>
    %c0_44 = arith.constant 0 : index
    %c375 = arith.constant 375 : index
    %108 = vector.load %arg15[%c0_44, %c375] : memref<2x400xf32, #tpu.memory_space<vmem>>, vector<1x25xf32>
    tpu.vector_store %arg15[%c0_44, %c375], %107 {strides = array<i32>} : memref<2x400xf32, #tpu.memory_space<vmem>>, vector<1x25xf32>,
    %109 = vector.extract_strided_slice %76 {offsets = [0, 25], sizes = [1, 25], strides = [1, 1]} : vector<16x50xf32> to vector<1x25xf32>
    %c1_45 = arith.constant 1 : index
    %c0_46 = arith.constant 0 : index
    %110 = vector.load %arg15[%c1_45, %c0_46] : memref<2x400xf32, #tpu.memory_space<vmem>>, vector<1x25xf32>
    tpu.vector_store %arg15[%c1_45, %c0_46], %109 {strides = array<i32>} : memref<2x400xf32, #tpu.memory_space<vmem>>, vector<1x25xf32>,
    %111 = vector.extract_strided_slice %76 {offsets = [1, 25], sizes = [1, 25], strides = [1, 1]} : vector<16x50xf32> to vector<1x25xf32>
    %c1_47 = arith.constant 1 : index
    %c25_48 = arith.constant 25 : index
    %112 = vector.load %arg15[%c1_47, %c25_48] : memref<2x400xf32, #tpu.memory_space<vmem>>, vector<1x25xf32>
    tpu.vector_store %arg15[%c1_47, %c25_48], %111 {strides = array<i32>} : memref<2x400xf32, #tpu.memory_space<vmem>>, vector<1x25xf32>,
    %113 = vector.extract_strided_slice %76 {offsets = [2, 25], sizes = [1, 25], strides = [1, 1]} : vector<16x50xf32> to vector<1x25xf32>
    %c1_49 = arith.constant 1 : index
    %c50_50 = arith.constant 50 : index
    %114 = vector.load %arg15[%c1_49, %c50_50] : memref<2x400xf32, #tpu.memory_space<vmem>>, vector<1x25xf32>
    tpu.vector_store %arg15[%c1_49, %c50_50], %113 {strides = array<i32>} : memref<2x400xf32, #tpu.memory_space<vmem>>, vector<1x25xf32>,
    %115 = vector.extract_strided_slice %76 {offsets = [3, 25], sizes = [1, 25], strides = [1, 1]} : vector<16x50xf32> to vector<1x25xf32>
    %c1_51 = arith.constant 1 : index
    %c75_52 = arith.constant 75 : index
    %116 = vector.load %arg15[%c1_51, %c75_52] : memref<2x400xf32, #tpu.memory_space<vmem>>, vector<1x25xf32>
    tpu.vector_store %arg15[%c1_51, %c75_52], %115 {strides = array<i32>} : memref<2x400xf32, #tpu.memory_space<vmem>>, vector<1x25xf32>,
    %117 = vector.extract_strided_slice %76 {offsets = [4, 25], sizes = [1, 25], strides = [1, 1]} : vector<16x50xf32> to vector<1x25xf32>
    %c1_53 = arith.constant 1 : index
    %c100_54 = arith.constant 100 : index
    %118 = vector.load %arg15[%c1_53, %c100_54] : memref<2x400xf32, #tpu.memory_space<vmem>>, vector<1x25xf32>
    tpu.vector_store %arg15[%c1_53, %c100_54], %117 {strides = array<i32>} : memref<2x400xf32, #tpu.memory_space<vmem>>, vector<1x25xf32>,
    %119 = vector.extract_strided_slice %76 {offsets = [5, 25], sizes = [1, 25], strides = [1, 1]} : vector<16x50xf32> to vector<1x25xf32>
    %c1_55 = arith.constant 1 : index
    %c125_56 = arith.constant 125 : index
    %120 = vector.load %arg15[%c1_55, %c125_56] : memref<2x400xf32, #tpu.memory_space<vmem>>, vector<1x25xf32>
    tpu.vector_store %arg15[%c1_55, %c125_56], %119 {strides = array<i32>} : memref<2x400xf32, #tpu.memory_space<vmem>>, vector<1x25xf32>,
    %121 = vector.extract_strided_slice %76 {offsets = [6, 25], sizes = [1, 25], strides = [1, 1]} : vector<16x50xf32> to vector<1x25xf32>
    %c1_57 = arith.constant 1 : index
    %c150_58 = arith.constant 150 : index
    %122 = vector.load %arg15[%c1_57, %c150_58] : memref<2x400xf32, #tpu.memory_space<vmem>>, vector<1x25xf32>
    tpu.vector_store %arg15[%c1_57, %c150_58], %121 {strides = array<i32>} : memref<2x400xf32, #tpu.memory_space<vmem>>, vector<1x25xf32>,
    %123 = vector.extract_strided_slice %76 {offsets = [7, 25], sizes = [1, 25], strides = [1, 1]} : vector<16x50xf32> to vector<1x25xf32>
    %c1_59 = arith.constant 1 : index
    %c175_60 = arith.constant 175 : index
    %124 = vector.load %arg15[%c1_59, %c175_60] : memref<2x400xf32, #tpu.memory_space<vmem>>, vector<1x25xf32>
    tpu.vector_store %arg15[%c1_59, %c175_60], %123 {strides = array<i32>} : memref<2x400xf32, #tpu.memory_space<vmem>>, vector<1x25xf32>,
    %125 = vector.extract_strided_slice %76 {offsets = [8, 25], sizes = [1, 25], strides = [1, 1]} : vector<16x50xf32> to vector<1x25xf32>
    %c1_61 = arith.constant 1 : index
    %c200_62 = arith.constant 200 : index
    %126 = vector.load %arg15[%c1_61, %c200_62] : memref<2x400xf32, #tpu.memory_space<vmem>>, vector<1x25xf32>
    tpu.vector_store %arg15[%c1_61, %c200_62], %125 {strides = array<i32>} : memref<2x400xf32, #tpu.memory_space<vmem>>, vector<1x25xf32>,
    %127 = vector.extract_strided_slice %76 {offsets = [9, 25], sizes = [1, 25], strides = [1, 1]} : vector<16x50xf32> to vector<1x25xf32>
    %c1_63 = arith.constant 1 : index
    %c225_64 = arith.constant 225 : index
    %128 = vector.load %arg15[%c1_63, %c225_64] : memref<2x400xf32, #tpu.memory_space<vmem>>, vector<1x25xf32>
    tpu.vector_store %arg15[%c1_63, %c225_64], %127 {strides = array<i32>} : memref<2x400xf32, #tpu.memory_space<vmem>>, vector<1x25xf32>,
    %129 = vector.extract_strided_slice %76 {offsets = [10, 25], sizes = [1, 25], strides = [1, 1]} : vector<16x50xf32> to vector<1x25xf32>
    %c1_65 = arith.constant 1 : index
    %c250_66 = arith.constant 250 : index
    %130 = vector.load %arg15[%c1_65, %c250_66] : memref<2x400xf32, #tpu.memory_space<vmem>>, vector<1x25xf32>
    tpu.vector_store %arg15[%c1_65, %c250_66], %129 {strides = array<i32>} : memref<2x400xf32, #tpu.memory_space<vmem>>, vector<1x25xf32>,
    %131 = vector.extract_strided_slice %76 {offsets = [11, 25], sizes = [1, 25], strides = [1, 1]} : vector<16x50xf32> to vector<1x25xf32>
    %c1_67 = arith.constant 1 : index
    %c275_68 = arith.constant 275 : index
    %132 = vector.load %arg15[%c1_67, %c275_68] : memref<2x400xf32, #tpu.memory_space<vmem>>, vector<1x25xf32>
    tpu.vector_store %arg15[%c1_67, %c275_68], %131 {strides = array<i32>} : memref<2x400xf32, #tpu.memory_space<vmem>>, vector<1x25xf32>,
    %133 = vector.extract_strided_slice %76 {offsets = [12, 25], sizes = [1, 25], strides = [1, 1]} : vector<16x50xf32> to vector<1x25xf32>
    %c1_69 = arith.constant 1 : index
    %c300_70 = arith.constant 300 : index
    %134 = vector.load %arg15[%c1_69, %c300_70] : memref<2x400xf32, #tpu.memory_space<vmem>>, vector<1x25xf32>
    tpu.vector_store %arg15[%c1_69, %c300_70], %133 {strides = array<i32>} : memref<2x400xf32, #tpu.memory_space<vmem>>, vector<1x25xf32>,
    %135 = vector.extract_strided_slice %76 {offsets = [13, 25], sizes = [1, 25], strides = [1, 1]} : vector<16x50xf32> to vector<1x25xf32>
    %c1_71 = arith.constant 1 : index
    %c325_72 = arith.constant 325 : index
    %136 = vector.load %arg15[%c1_71, %c325_72] : memref<2x400xf32, #tpu.memory_space<vmem>>, vector<1x25xf32>
    tpu.vector_store %arg15[%c1_71, %c325_72], %135 {strides = array<i32>} : memref<2x400xf32, #tpu.memory_space<vmem>>, vector<1x25xf32>,
    %137 = vector.extract_strided_slice %76 {offsets = [14, 25], sizes = [1, 25], strides = [1, 1]} : vector<16x50xf32> to vector<1x25xf32>
    %c1_73 = arith.constant 1 : index
    %c350_74 = arith.constant 350 : index
    %138 = vector.load %arg15[%c1_73, %c350_74] : memref<2x400xf32, #tpu.memory_space<vmem>>, vector<1x25xf32>
    tpu.vector_store %arg15[%c1_73, %c350_74], %137 {strides = array<i32>} : memref<2x400xf32, #tpu.memory_space<vmem>>, vector<1x25xf32>,
    %139 = vector.extract_strided_slice %76 {offsets = [15, 25], sizes = [1, 25], strides = [1, 1]} : vector<16x50xf32> to vector<1x25xf32>
    %c1_75 = arith.constant 1 : index
    %c375_76 = arith.constant 375 : index
    %140 = vector.load %arg15[%c1_75, %c375_76] : memref<2x400xf32, #tpu.memory_space<vmem>>, vector<1x25xf32>
    tpu.vector_store %arg15[%c1_75, %c375_76], %139 {strides = array<i32>} : memref<2x400xf32, #tpu.memory_space<vmem>>, vector<1x25xf32>,
    %c0_77 = arith.constant 0 : index
    %c0_78 = arith.constant 0 : index
    %141 = vector.load %arg15[%c0_77, %c0_78] : memref<2x400xf32, #tpu.memory_space<vmem>>, vector<2x400xf32>
    %c0_79 = arith.constant 0 : index
    %c0_80 = arith.constant 0 : index
    %142 = vector.load %arg6[%c0_79, %c0_80] : memref<400x120xf32, #tpu.memory_space<vmem>>, vector<400x120xf32>
    %cst_81 = arith.constant dense<0.000000e+00> : vector<2x120xf32>
    %143 = tpu.matmul %141, %142, %cst_81 {dimension_numbers = #tpu.dot_dimension_numbers<[1], [0], [0], [1], [0, 0, 1, 1], [], []>} : vector<2x400xf32>, vector<400x120xf32>, vector<2x120xf32> -> vector<2x120xf32>
    %c0_82 = arith.constant 0 : index
    %c0_83 = arith.constant 0 : index
    %144 = vector.load %arg7[%c0_82, %c0_83] : memref<1x120xf32, #tpu.memory_space<vmem>>, vector<1x120xf32>
    %145 = vector.broadcast %144 : vector<1x120xf32> to vector<2x120xf32>
    %146 = arith.addf %143, %145 : vector<2x120xf32>
    %cst_84 = arith.constant dense<0.000000e+00> : vector<120xf32>
    %147 = vector.multi_reduction <add>, %146, %cst_84 [0] : vector<2x120xf32> to vector<120xf32>
    %148 = vector.shape_cast %147 : vector<120xf32> to vector<1x120xf32>
    %cst_85 = arith.constant 2.000000e+00 : f32
    %149 = vector.broadcast %cst_85 : f32 to vector<1x120xf32>
    %150 = arith.divf %148, %149 : vector<1x120xf32>
    %151 = arith.mulf %146, %146 : vector<2x120xf32>
    %cst_86 = arith.constant dense<0.000000e+00> : vector<120xf32>
    %152 = vector.multi_reduction <add>, %151, %cst_86 [0] : vector<2x120xf32> to vector<120xf32>
    %153 = vector.shape_cast %152 : vector<120xf32> to vector<1x120xf32>
    %cst_87 = arith.constant 2.000000e+00 : f32
    %154 = vector.broadcast %cst_87 : f32 to vector<1x120xf32>
    %155 = arith.divf %153, %154 : vector<1x120xf32>
    %156 = arith.mulf %150, %150 : vector<1x120xf32>
    %157 = arith.subf %155, %156 : vector<1x120xf32>
    %c0_88 = arith.constant 0 : index
    %c0_89 = arith.constant 0 : index
    %158 = vector.load %arg8[%c0_88, %c0_89] : memref<1x120xf32, #tpu.memory_space<vmem>>, vector<1x120xf32>
    %159 = vector.broadcast %150 : vector<1x120xf32> to vector<2x120xf32>
    %160 = arith.subf %146, %159 : vector<2x120xf32>
    %161 = vector.broadcast %158 : vector<1x120xf32> to vector<2x120xf32>
    %162 = arith.mulf %161, %160 : vector<2x120xf32>
    %cst_90 = arith.constant 9.99999974E-6 : f32
    %163 = vector.broadcast %cst_90 : f32 to vector<1x120xf32>
    %164 = arith.addf %157, %163 : vector<1x120xf32>
    %165 = math.rsqrt %164 : vector<1x120xf32>
    %166 = vector.broadcast %165 : vector<1x120xf32> to vector<2x120xf32>
    %167 = arith.mulf %162, %166 : vector<2x120xf32>
    %c0_91 = arith.constant 0 : index
    %c0_92 = arith.constant 0 : index
    %168 = vector.load %arg9[%c0_91, %c0_92] : memref<1x120xf32, #tpu.memory_space<vmem>>, vector<1x120xf32>
    %169 = vector.broadcast %168 : vector<1x120xf32> to vector<2x120xf32>
    %170 = arith.addf %167, %169 : vector<2x120xf32>
    %cst_93 = arith.constant 0.000000e+00 : f32
    %171 = vector.broadcast %cst_93 : f32 to vector<2x120xf32>
    %172 = arith.maximumf %170, %171 : vector<2x120xf32>
    %c0_94 = arith.constant 0 : index
    %c0_95 = arith.constant 0 : index
    %173 = vector.load %arg10[%c0_94, %c0_95] : memref<120x84xf32, #tpu.memory_space<vmem>>, vector<120x84xf32>
    %cst_96 = arith.constant dense<0.000000e+00> : vector<2x84xf32>
    %174 = tpu.matmul %172, %173, %cst_96 {dimension_numbers = #tpu.dot_dimension_numbers<[1], [0], [0], [1], [0, 0, 1, 1], [], []>} : vector<2x120xf32>, vector<120x84xf32>, vector<2x84xf32> -> vector<2x84xf32>
    %c0_97 = arith.constant 0 : index
    %c0_98 = arith.constant 0 : index
    %175 = vector.load %arg11[%c0_97, %c0_98] : memref<1x84xf32, #tpu.memory_space<vmem>>, vector<1x84xf32>
    %176 = vector.broadcast %175 : vector<1x84xf32> to vector<2x84xf32>
    %177 = arith.addf %174, %176 : vector<2x84xf32>
    %cst_99 = arith.constant 0.000000e+00 : f32
    %178 = vector.broadcast %cst_99 : f32 to vector<2x84xf32>
    %179 = arith.maximumf %177, %178 : vector<2x84xf32>
    %c0_100 = arith.constant 0 : index
    %c0_101 = arith.constant 0 : index
    %180 = vector.load %arg12[%c0_100, %c0_101] : memref<84x10xf32, #tpu.memory_space<vmem>>, vector<84x10xf32>
    %cst_102 = arith.constant dense<0.000000e+00> : vector<2x10xf32>
    %181 = tpu.matmul %179, %180, %cst_102 {dimension_numbers = #tpu.dot_dimension_numbers<[1], [0], [0], [1], [0, 0, 1, 1], [], []>} : vector<2x84xf32>, vector<84x10xf32>, vector<2x10xf32> -> vector<2x10xf32>
    %c0_103 = arith.constant 0 : index
    %c0_104 = arith.constant 0 : index
    %182 = vector.load %arg13[%c0_103, %c0_104] : memref<1x10xf32, #tpu.memory_space<vmem>>, vector<1x10xf32>
    %183 = vector.broadcast %182 : vector<1x10xf32> to vector<2x10xf32>
    %184 = arith.addf %181, %183 : vector<2x10xf32>
    %c0_105 = arith.constant 0 : index
    %c0_106 = arith.constant 0 : index
    %185 = vector.load %arg14[%c0_105, %c0_106] : memref<2x10xf32, #tpu.memory_space<vmem>>, vector<2x10xf32>
    tpu.vector_store %arg14[%c0_105, %c0_106], %184 {strides = array<i32>} : memref<2x10xf32, #tpu.memory_space<vmem>>, vector<2x10xf32>,
    return
  }
  func.func @transform_0(%arg0: i32) -> (i32, i32, i32) {
    %c0_i32 = arith.constant 0 : i32
    %c0_i32_0 = arith.constant 0 : i32
    %c0_i32_1 = arith.constant 0 : i32
    %c0_i32_2 = arith.constant 0 : i32
    return %c0_i32, %c0_i32_0, %c0_i32_1 : i32, i32, i32
  }
  func.func @transform_1(%arg0: i32) -> (i32, i32) {
    %c0_i32 = arith.constant 0 : i32
    %c0_i32_0 = arith.constant 0 : i32
    %c0_i32_1 = arith.constant 0 : i32
    return %c0_i32, %c0_i32_0 : i32, i32
  }
  func.func @transform_2(%arg0: i32) -> (i32, i32) {
    %c0_i32 = arith.constant 0 : i32
    %c0_i32_0 = arith.constant 0 : i32
    %c0_i32_1 = arith.constant 0 : i32
    return %c0_i32, %c0_i32_0 : i32, i32
  }
  func.func @transform_3(%arg0: i32) -> (i32, i32) {
    %c0_i32 = arith.constant 0 : i32
    %c0_i32_0 = arith.constant 0 : i32
    %c0_i32_1 = arith.constant 0 : i32
    return %c0_i32, %c0_i32_0 : i32, i32
  }
  func.func @transform_4(%arg0: i32) -> (i32, i32) {
    %c0_i32 = arith.constant 0 : i32
    %c0_i32_0 = arith.constant 0 : i32
    %c0_i32_1 = arith.constant 0 : i32
    return %c0_i32, %c0_i32_0 : i32, i32
  }
  func.func @transform_5(%arg0: i32) -> (i32, i32) {
    %c0_i32 = arith.constant 0 : i32
    %c0_i32_0 = arith.constant 0 : i32
    %c0_i32_1 = arith.constant 0 : i32
    return %c0_i32, %c0_i32_0 : i32, i32
  }
  func.func @transform_6(%arg0: i32) -> (i32, i32) {
    %c0_i32 = arith.constant 0 : i32
    %c0_i32_0 = arith.constant 0 : i32
    %c0_i32_1 = arith.constant 0 : i32
    return %c0_i32, %c0_i32_0 : i32, i32
  }
  func.func @transform_7(%arg0: i32) -> (i32, i32) {
    %c0_i32 = arith.constant 0 : i32
    %c0_i32_0 = arith.constant 0 : i32
    %c0_i32_1 = arith.constant 0 : i32
    return %c0_i32, %c0_i32_0 : i32, i32
  }
  func.func @transform_8(%arg0: i32) -> (i32, i32) {
    %c0_i32 = arith.constant 0 : i32
    %c0_i32_0 = arith.constant 0 : i32
    %c0_i32_1 = arith.constant 0 : i32
    return %c0_i32, %c0_i32_0 : i32, i32
  }
  func.func @transform_9(%arg0: i32) -> (i32, i32) {
    %c0_i32 = arith.constant 0 : i32
    %c0_i32_0 = arith.constant 0 : i32
    %c0_i32_1 = arith.constant 0 : i32
    return %c0_i32, %c0_i32_0 : i32, i32
  }
  func.func @transform_10(%arg0: i32) -> (i32, i32) {
    %c0_i32 = arith.constant 0 : i32
    %c0_i32_0 = arith.constant 0 : i32
    %c0_i32_1 = arith.constant 0 : i32
    return %c0_i32, %c0_i32_0 : i32, i32
  }
  func.func @transform_11(%arg0: i32) -> (i32, i32) {
    %c0_i32 = arith.constant 0 : i32
    %c0_i32_0 = arith.constant 0 : i32
    %c0_i32_1 = arith.constant 0 : i32
    return %c0_i32, %c0_i32_0 : i32, i32
  }
  func.func @transform_12(%arg0: i32) -> (i32, i32) {
    %c0_i32 = arith.constant 0 : i32
    %c0_i32_0 = arith.constant 0 : i32
    %c0_i32_1 = arith.constant 0 : i32
    return %c0_i32, %c0_i32_0 : i32, i32
  }
  func.func @transform_13(%arg0: i32) -> (i32, i32) {
    %c0_i32 = arith.constant 0 : i32
    %c0_i32_0 = arith.constant 0 : i32
    %c0_i32_1 = arith.constant 0 : i32
    return %c0_i32, %c0_i32_0 : i32, i32
  }
}

</mosaic_0001>

<llo_original>
// kernel: lenet_bn_forward.2
$region0: #{lenet_bn_forward.2}
  #allocation0 [shape = 'u32[]', space=smem, size = 0x4, offset = 0x4, fixed_abs, tag = 'smem constant byte address 0x4 - core index']
  #allocation1 [shape = 'u32[144,128]{1,0:T(1,128)}', space=vmem, size = 0x12000, scoped, tag = 'internal scratch']
  %s0 = inlined_call_operand.vmem [shape: f32[4,75,392], index: 0, kind: input, shape index: {}]
  %s1 = inlined_call_operand.vmem [shape: f32[6,75], index: 1, kind: input, shape index: {}]
  %s2 = inlined_call_operand.vmem [shape: f32[6,1], index: 2, kind: input, shape index: {}]
  %s3 = inlined_call_operand.vmem [shape: f32[6,1], index: 3, kind: input, shape index: {}]
  %s4 = inlined_call_operand.vmem [shape: f32[6,1], index: 4, kind: input, shape index: {}]
  %s5 = inlined_call_operand.vmem [shape: f32[6,392], index: 5, kind: output, shape index: {}]
  %s6 = sld [smem:[#allocation0]]
  $region30: #{lenet_bn_forward.2} parent=0
    _
  %s8 = ssub.s32 1, %s6
  %s9 = scalar_select 0, %s8, %s6
  // Predicated region
  $region2: #{lenet_bn_forward.2} parent=0 // pred_check
    _
  $region3: #{lenet_bn_forward.2} parent=0 // pred_check_branch
    %11 = sbr.rel (0) target = $region5
  $region4: #{lenet_bn_forward.2} parent=0 // pred_region
    _
  $region5: #{lenet_bn_forward.2} parent=0 // pred_fallthru
    _
  // Predicated region
  $region6: #{lenet_bn_forward.2} parent=0 // pred_check
    _
  $region7: #{lenet_bn_forward.2} parent=0 // pred_check_branch
    %13 = sbr.rel (0) target = $region9
  $region8: #{lenet_bn_forward.2} parent=0 // pred_region
    _
  $region9: #{lenet_bn_forward.2} parent=0 // pred_fallthru
    _
  // Predicated region
  $region10: #{lenet_bn_forward.2} parent=0 // pred_check
    _
  $region11: #{lenet_bn_forward.2} parent=0 // pred_check_branch
    %15 = sbr.rel (0) target = $region13
  $region12: #{lenet_bn_forward.2} parent=0 // pred_region
    _
  $region13: #{lenet_bn_forward.2} parent=0 // pred_fallthru
    _
  // Predicated region
  $region14: #{lenet_bn_forward.2} parent=0 // pred_check
    _
  $region15: #{lenet_bn_forward.2} parent=0 // pred_check_branch
    %17 = sbr.rel (0) target = $region17
  $region16: #{lenet_bn_forward.2} parent=0 // pred_region
    _
  $region17: #{lenet_bn_forward.2} parent=0 // pred_fallthru
    _
  // Predicated region
  $region18: #{lenet_bn_forward.2} parent=0 // pred_check
    _
  $region19: #{lenet_bn_forward.2} parent=0 // pred_check_branch
    %19 = sbr.rel (0) target = $region21
  $region20: #{lenet_bn_forward.2} parent=0 // pred_region
    _
  $region21: #{lenet_bn_forward.2} parent=0 // pred_fallthru
    _
  %v20 = vld [vmem:[%s1] sm:$0x3f]
  %v21 = vld [vmem:[%s2] sm:$0x3f]
  %v22 = vld [vmem:[%s3] sm:$0x3f]
  %v23 = vld [vmem:[%s4] sm:$0x3f]
  %v24 = vld [vmem:[%s0] sm:$0xff]
  %v25 = vld [vmem:[%s0 + $0x8] sm:$0xff]
  %v26 = vld [vmem:[%s0 + $0x10] sm:$0xff]
  %v27 = vld [vmem:[%s0 + $0x18] sm:$0xff]
  %v28 = vld [vmem:[%s0 + $0x20] sm:$0xff]
  %v29 = vld [vmem:[%s0 + $0x28] sm:$0xff]
  %v30 = vld [vmem:[%s0 + $0x30] sm:$0xff]
  %v31 = vld [vmem:[%s0 + $0x38] sm:$0xff]
  %v32 = vld [vmem:[%s0 + $0x40] sm:$0xff]
  %v33 = vld [vmem:[%s0 + $0x48] sm:$0xff]
  %v34 = vld [vmem:[%s0 + $0x50] sm:$0xff]
  %v35 = vld [vmem:[%s0 + $0x58] sm:$0xff]
  %v36 = vld [vmem:[%s0 + $0x60] sm:$0xff]
  %v37 = vld [vmem:[%s0 + $0x68] sm:$0xff]
  %v38 = vld [vmem:[%s0 + $0x70] sm:$0xff]
  %v39 = vld [vmem:[%s0 + $0x78] sm:$0xff]
  %v40 = vld [vmem:[%s0 + $0x80] sm:$0xff]
  %v41 = vld [vmem:[%s0 + $0x88] sm:$0xff]
  %v42 = vld [vmem:[%s0 + $0x90] sm:$0xff]
  %v43 = vld [vmem:[%s0 + $0x98] sm:$0xff]
  %v44 = vld [vmem:[%s0 + $0xa0] sm:$0xff]
  %v45 = vld [vmem:[%s0 + $0xa8] sm:$0xff]
  %v46 = vld [vmem:[%s0 + $0xb0] sm:$0xff]
  %v47 = vld [vmem:[%s0 + $0xb8] sm:$0xff]
  %v48 = vld [vmem:[%s0 + $0xc0] sm:$0xff]
  %v49 = vld [vmem:[%s0 + $0xc8] sm:$0xff]
  %v50 = vld [vmem:[%s0 + $0xd0] sm:$0xff]
  %v51 = vld [vmem:[%s0 + $0xd8] sm:$0xff]
  %v52 = vld [vmem:[%s0 + $0xe0] sm:$0xff]
  %v53 = vld [vmem:[%s0 + $0xe8] sm:$0xff]
  %v54 = vld [vmem:[%s0 + $0xf0] sm:$0xff]
  %v55 = vld [vmem:[%s0 + $0xf8] sm:$0xff]
  %v56 = vld [vmem:[%s0 + $0x100] sm:$0xff]
  %v57 = vld [vmem:[%s0 + $0x108] sm:$0xff]
  %v58 = vld [vmem:[%s0 + $0x110] sm:$0xff]
  %v59 = vld [vmem:[%s0 + $0x118] sm:$0xff]
  %v60 = vld [vmem:[%s0 + $0x120] sm:$0x7]
  %v61 = vld [vmem:[%s0 + $0x128] sm:$0x7]
  %v62 = vld [vmem:[%s0 + $0x130] sm:$0x7]
  %v63 = vld [vmem:[%s0 + $0x138] sm:$0x7]
  %65 = vset.pattern.permute.xlu0 0
  %66 = vperm.xlu0 %65, %v21
  %v67 = vpop.permute.xlu0 %66
  %vm69 = vcmask 613376
  %v71 = vsel %vm69, %v20, 0
  %vm73 = vcmask 1042432
  %v75 = vsel %vm73, %v60, 0
  %v78 = vsel %vm73, %v61, 0
  %v81 = vsel %vm73, %v62, 0
  %v84 = vsel %vm73, %v63, 0
  %86 = vmatprep.subr.mxu0 %v25
  %87 = vmatpush1.msra.mxu0 %v24
  %88 = vmatprep.subr.mxu0 %v29
  %89 = vmatpush1.msra.mxu0 %v28
  %90 = vmatprep.subr.mxu0 %v33
  %91 = vmatpush1.msra.mxu0 %v32
  %92 = vmatprep.subr.mxu0 %v37
  %93 = vmatpush1.msra.mxu0 %v36
  %94 = vmatprep.subr.mxu0 %v41
  %95 = vmatpush1.msra.mxu0 %v40
  %96 = vmatprep.subr.mxu0 %v45
  %97 = vmatpush1.msra.mxu0 %v44
  %98 = vmatprep.subr.mxu0 %v49
  %99 = vmatpush1.msra.mxu0 %v48
  %100 = vmatprep.subr.mxu0 %v53
  %101 = vmatpush1.msra.mxu0 %v52
  %102 = vmatprep.subr.mxu0 %v57
  %103 = vmatpush1.msra.mxu0 %v56
  %104 = vmatprep.subr.mxu0 %v78
  %105 = vmatpush1.msra.mxu0 %v75
  %106 = vmatprep.subr.mxu0 0.0
  %107 = vmatpush1.msra.mxu0 0.0
  %108 = vmatprep.subr.mxu0 0.0
  %109 = vmatpush1.msra.mxu0 0.0
  %110 = vmatprep.subr.mxu0 0.0
  %111 = vmatpush1.msra.mxu0 0.0
  %112 = vmatprep.subr.mxu0 0.0
  %113 = vmatpush1.msra.mxu0 0.0
  %114 = vmatprep.subr.mxu0 0.0
  %115 = vmatpush1.msra.mxu0 0.0
  %116 = vmatprep.subr.mxu0 0.0
  %117 = vmatpush1.msra.mxu0 0.0
  %118 = vmatprep.subr.mxu0 0.0
  %119 = vmatpush1.msra.mxu0 0.0
  %120 = vmatprep.subr.mxu0 0.0
  %121 = vmatpush1.msra.mxu0 0.0
  %122 = vmatprep.subr.mxu0 0.0
  %123 = vmatpush1.msra.mxu0 0.0
  %124 = vmatprep.subr.mxu0 0.0
  %125 = vmatpush1.msra.mxu0 0.0
  %126 = vmatprep.subr.mxu0 0.0
  %127 = vmatpush1.msra.mxu0 0.0
  %128 = vmatprep.subr.mxu0 0.0
  %129 = vmatpush1.msra.mxu0 0.0
  %130 = vmatprep.subr.mxu0 0.0
  %131 = vmatpush1.msra.mxu0 0.0
  %132 = vmatprep.subr.mxu0 0.0
  %133 = vmatpush1.msra.mxu0 0.0
  %134 = vmatprep.subr.mxu0 0.0
  %135 = vmatpush1.msra.mxu0 0.0
  %136 = vmatprep.subr.mxu0 0.0
  %137 = vmatpush1.msra.mxu0 0.0
  %138 = vmatprep.subr.mxu0 0.0
  %139 = vmatpush1.msra.mxu0 0.0
  %140 = vmatprep.subr.mxu0 0.0
  %141 = vmatpush1.msra.mxu0 0.0
  %142 = vmatprep.subr.mxu0 0.0
  %143 = vmatpush1.msra.mxu0 0.0
  %144 = vmatprep.subr.mxu0 0.0
  %145 = vmatpush1.msra.mxu0 0.0
  %146 = vmatprep.subr.mxu0 0.0
  %147 = vmatpush1.msra.mxu0 0.0
  %148 = vmatprep.subr.mxu0 0.0
  %149 = vmatpush1.msra.mxu0 0.0
  %150 = vmatprep.mubr.f32.mxu0 0.0
  %151 = vmatmul.mubr.f32.gmra.mrb[0].mxu0 %v71
  %v152 = vpop.f32.mrb[0].mxu0
  %v153 = vadd.f32 %v67, %v152
  %v154 = vpop.f32.mrb[0].mxu0
  %v155 = vadd.f32 %v67, %v154
  %156 = vdwg.mxu0
  %157 = vmatprep.subr.mxu0 %v27
  %158 = vmatpush1.msra.mxu0 %v26
  %159 = vmatprep.subr.mxu0 %v31
  %160 = vmatpush1.msra.mxu0 %v30
  %161 = vmatprep.subr.mxu0 %v35
  %162 = vmatpush1.msra.mxu0 %v34
  %163 = vmatprep.subr.mxu0 %v39
  %164 = vmatpush1.msra.mxu0 %v38
  %165 = vmatprep.subr.mxu0 %v43
  %166 = vmatpush1.msra.mxu0 %v42
  %167 = vmatprep.subr.mxu0 %v47
  %168 = vmatpush1.msra.mxu0 %v46
  %169 = vmatprep.subr.mxu0 %v51
  %170 = vmatpush1.msra.mxu0 %v50
  %171 = vmatprep.subr.mxu0 %v55
  %172 = vmatpush1.msra.mxu0 %v54
  %173 = vmatprep.subr.mxu0 %v59
  %174 = vmatpush1.msra.mxu0 %v58
  %175 = vmatprep.subr.mxu0 %v84
  %176 = vmatpush1.msra.mxu0 %v81
  %177 = vmatprep.subr.mxu0 0.0
  %178 = vmatpush1.msra.mxu0 0.0
  %179 = vmatprep.subr.mxu0 0.0
  %180 = vmatpush1.msra.mxu0 0.0
  %181 = vmatprep.subr.mxu0 0.0
  %182 = vmatpush1.msra.mxu0 0.0
  %183 = vmatprep.subr.mxu0 0.0
  %184 = vmatpush1.msra.mxu0 0.0
  %185 = vmatprep.subr.mxu0 0.0
  %186 = vmatpush1.msra.mxu0 0.0
  %187 = vmatprep.subr.mxu0 0.0
  %188 = vmatpush1.msra.mxu0 0.0
  %189 = vmatprep.subr.mxu0 0.0
  %190 = vmatpush1.msra.mxu0 0.0
  %191 = vmatprep.subr.mxu0 0.0
  %192 = vmatpush1.msra.mxu0 0.0
  %193 = vmatprep.subr.mxu0 0.0
  %194 = vmatpush1.msra.mxu0 0.0
  %195 = vmatprep.subr.mxu0 0.0
  %196 = vmatpush1.msra.mxu0 0.0
  %197 = vmatprep.subr.mxu0 0.0
  %198 = vmatpush1.msra.mxu0 0.0
  %199 = vmatprep.subr.mxu0 0.0
  %200 = vmatpush1.msra.mxu0 0.0
  %201 = vmatprep.subr.mxu0 0.0
  %202 = vmatpush1.msra.mxu0 0.0
  %203 = vmatprep.subr.mxu0 0.0
  %204 = vmatpush1.msra.mxu0 0.0
  %205 = vmatprep.subr.mxu0 0.0
  %206 = vmatpush1.msra.mxu0 0.0
  %207 = vmatprep.subr.mxu0 0.0
  %208 = vmatpush1.msra.mxu0 0.0
  %209 = vmatprep.subr.mxu0 0.0
  %210 = vmatpush1.msra.mxu0 0.0
  %211 = vmatprep.subr.mxu0 0.0
  %212 = vmatpush1.msra.mxu0 0.0
  %213 = vmatprep.subr.mxu0 0.0
  %214 = vmatpush1.msra.mxu0 0.0
  %215 = vmatprep.subr.mxu0 0.0
  %216 = vmatpush1.msra.mxu0 0.0
  %217 = vmatprep.subr.mxu0 0.0
  %218 = vmatpush1.msra.mxu0 0.0
  %219 = vmatprep.subr.mxu0 0.0
  %220 = vmatpush1.msra.mxu0 0.0
  %221 = vmatprep.mubr.f32.mxu0 0.0
  %222 = vmatmul.mubr.f32.gmra.mrb[0].mxu0 %v71
  %v223 = vpop.f32.mrb[0].mxu0
  %v224 = vadd.f32 %v67, %v223
  %v225 = vpop.f32.mrb[0].mxu0
  %v226 = vadd.f32 %v67, %v225
  %227 = vdwg.mxu0
  %s228 = scalar_lea.vmem %s0, 320
  %v229 = vld [vmem:[%s228] sm:$0xff]
  %v230 = vld [vmem:[%s228 + $0x8] sm:$0xff]
  %v231 = vld [vmem:[%s228 + $0x10] sm:$0xff]
  %v232 = vld [vmem:[%s228 + $0x18] sm:$0xff]
  %v233 = vld [vmem:[%s228 + $0x20] sm:$0xff]
  %v234 = vld [vmem:[%s228 + $0x28] sm:$0xff]
  %v235 = vld [vmem:[%s228 + $0x30] sm:$0xff]
  %v236 = vld [vmem:[%s228 + $0x38] sm:$0xff]
  %v237 = vld [vmem:[%s228 + $0x40] sm:$0xff]
  %v238 = vld [vmem:[%s228 + $0x48] sm:$0xff]
  %v239 = vld [vmem:[%s228 + $0x50] sm:$0xff]
  %v240 = vld [vmem:[%s228 + $0x58] sm:$0xff]
  %v241 = vld [vmem:[%s228 + $0x60] sm:$0xff]
  %v242 = vld [vmem:[%s228 + $0x68] sm:$0xff]
  %v243 = vld [vmem:[%s228 + $0x70] sm:$0xff]
  %v244 = vld [vmem:[%s228 + $0x78] sm:$0xff]
  %v245 = vld [vmem:[%s228 + $0x80] sm:$0xff]
  %v246 = vld [vmem:[%s228 + $0x88] sm:$0xff]
  %v247 = vld [vmem:[%s228 + $0x90] sm:$0xff]
  %v248 = vld [vmem:[%s228 + $0x98] sm:$0xff]
  %v249 = vld [vmem:[%s228 + $0xa0] sm:$0xff]
  %v250 = vld [vmem:[%s228 + $0xa8] sm:$0xff]
  %v251 = vld [vmem:[%s228 + $0xb0] sm:$0xff]
  %v252 = vld [vmem:[%s228 + $0xb8] sm:$0xff]
  %v253 = vld [vmem:[%s228 + $0xc0] sm:$0xff]
  %v254 = vld [vmem:[%s228 + $0xc8] sm:$0xff]
  %v255 = vld [vmem:[%s228 + $0xd0] sm:$0xff]
  %v256 = vld [vmem:[%s228 + $0xd8] sm:$0xff]
  %v257 = vld [vmem:[%s228 + $0xe0] sm:$0xff]
  %v258 = vld [vmem:[%s228 + $0xe8] sm:$0xff]
  %v259 = vld [vmem:[%s228 + $0xf0] sm:$0xff]
  %v260 = vld [vmem:[%s228 + $0xf8] sm:$0xff]
  %v261 = vld [vmem:[%s228 + $0x100] sm:$0xff]
  %v262 = vld [vmem:[%s228 + $0x108] sm:$0xff]
  %v263 = vld [vmem:[%s228 + $0x110] sm:$0xff]
  %v264 = vld [vmem:[%s228 + $0x118] sm:$0xff]
  %v265 = vld [vmem:[%s228 + $0x120] sm:$0x7]
  %v266 = vld [vmem:[%s228 + $0x128] sm:$0x7]
  %v267 = vld [vmem:[%s228 + $0x130] sm:$0x7]
  %v268 = vld [vmem:[%s228 + $0x138] sm:$0x7]
  %v270 = vsel %vm73, %v265, 0
  %v273 = vsel %vm73, %v266, 0
  %v276 = vsel %vm73, %v267, 0
  %v279 = vsel %vm73, %v268, 0
  %281 = vmatprep.subr.mxu0 %v230
  %282 = vmatpush1.msra.mxu0 %v229
  %283 = vmatprep.subr.mxu0 %v234
  %284 = vmatpush1.msra.mxu0 %v233
  %285 = vmatprep.subr.mxu0 %v238
  %286 = vmatpush1.msra.mxu0 %v237
  %287 = vmatprep.subr.mxu0 %v242
  %288 = vmatpush1.msra.mxu0 %v241
  %289 = vmatprep.subr.mxu0 %v246
  %290 = vmatpush1.msra.mxu0 %v245
  %291 = vmatprep.subr.mxu0 %v250
  %292 = vmatpush1.msra.mxu0 %v249
  %293 = vmatprep.subr.mxu0 %v254
  %294 = vmatpush1.msra.mxu0 %v253
  %295 = vmatprep.subr.mxu0 %v258
  %296 = vmatpush1.msra.mxu0 %v257
  %297 = vmatprep.subr.mxu0 %v262
  %298 = vmatpush1.msra.mxu0 %v261
  %299 = vmatprep.subr.mxu0 %v273
  %300 = vmatpush1.msra.mxu0 %v270
  %301 = vmatprep.subr.mxu0 0.0
  %302 = vmatpush1.msra.mxu0 0.0
  %303 = vmatprep.subr.mxu0 0.0
  %304 = vmatpush1.msra.mxu0 0.0
  %305 = vmatprep.subr.mxu0 0.0
  %306 = vmatpush1.msra.mxu0 0.0
  %307 = vmatprep.subr.mxu0 0.0
  %308 = vmatpush1.msra.mxu0 0.0
  %309 = vmatprep.subr.mxu0 0.0
  %310 = vmatpush1.msra.mxu0 0.0
  %311 = vmatprep.subr.mxu0 0.0
  %312 = vmatpush1.msra.mxu0 0.0
  %313 = vmatprep.subr.mxu0 0.0
  %314 = vmatpush1.msra.mxu0 0.0
  %315 = vmatprep.subr.mxu0 0.0
  %316 = vmatpush1.msra.mxu0 0.0
  %317 = vmatprep.subr.mxu0 0.0
  %318 = vmatpush1.msra.mxu0 0.0
  %319 = vmatprep.subr.mxu0 0.0
  %320 = vmatpush1.msra.mxu0 0.0
  %321 = vmatprep.subr.mxu0 0.0
  %322 = vmatpush1.msra.mxu0 0.0
  %323 = vmatprep.subr.mxu0 0.0
  %324 = vmatpush1.msra.mxu0 0.0
  %325 = vmatprep.subr.mxu0 0.0
  %326 = vmatpush1.msra.mxu0 0.0
  %327 = vmatprep.subr.mxu0 0.0
  %328 = vmatpush1.msra.mxu0 0.0
  %329 = vmatprep.subr.mxu0 0.0
  %330 = vmatpush1.msra.mxu0 0.0
  %331 = vmatprep.subr.mxu0 0.0
  %332 = vmatpush1.msra.mxu0 0.0
  %333 = vmatprep.subr.mxu0 0.0
  %334 = vmatpush1.msra.mxu0 0.0
  %335 = vmatprep.subr.mxu0 0.0
  %336 = vmatpush1.msra.mxu0 0.0
  %337 = vmatprep.subr.mxu0 0.0
  %338 = vmatpush1.msra.mxu0 0.0
  %339 = vmatprep.subr.mxu0 0.0
  %340 = vmatpush1.msra.mxu0 0.0
  %341 = vmatprep.subr.mxu0 0.0
  %342 = vmatpush1.msra.mxu0 0.0
  %343 = vmatprep.subr.mxu0 0.0
  %344 = vmatpush1.msra.mxu0 0.0
  %345 = vmatprep.mubr.f32.mxu0 0.0
  %346 = vmatmul.mubr.f32.gmra.mrb[0].mxu0 %v71
  %v347 = vpop.f32.mrb[0].mxu0
  %v348 = vadd.f32 %v67, %v347
  %v349 = vpop.f32.mrb[0].mxu0
  %v350 = vadd.f32 %v67, %v349
  %351 = vdwg.mxu0
  %352 = vmatprep.subr.mxu0 %v232
  %353 = vmatpush1.msra.mxu0 %v231
  %354 = vmatprep.subr.mxu0 %v236
  %355 = vmatpush1.msra.mxu0 %v235
  %356 = vmatprep.subr.mxu0 %v240
  %357 = vmatpush1.msra.mxu0 %v239
  %358 = vmatprep.subr.mxu0 %v244
  %359 = vmatpush1.msra.mxu0 %v243
  %360 = vmatprep.subr.mxu0 %v248
  %361 = vmatpush1.msra.mxu0 %v247
  %362 = vmatprep.subr.mxu0 %v252
  %363 = vmatpush1.msra.mxu0 %v251
  %364 = vmatprep.subr.mxu0 %v256
  %365 = vmatpush1.msra.mxu0 %v255
  %366 = vmatprep.subr.mxu0 %v260
  %367 = vmatpush1.msra.mxu0 %v259
  %368 = vmatprep.subr.mxu0 %v264
  %369 = vmatpush1.msra.mxu0 %v263
  %370 = vmatprep.subr.mxu0 %v279
  %371 = vmatpush1.msra.mxu0 %v276
  %372 = vmatprep.subr.mxu0 0.0
  %373 = vmatpush1.msra.mxu0 0.0
  %374 = vmatprep.subr.mxu0 0.0
  %375 = vmatpush1.msra.mxu0 0.0
  %376 = vmatprep.subr.mxu0 0.0
  %377 = vmatpush1.msra.mxu0 0.0
  %378 = vmatprep.subr.mxu0 0.0
  %379 = vmatpush1.msra.mxu0 0.0
  %380 = vmatprep.subr.mxu0 0.0
  %381 = vmatpush1.msra.mxu0 0.0
  %382 = vmatprep.subr.mxu0 0.0
  %383 = vmatpush1.msra.mxu0 0.0
  %384 = vmatprep.subr.mxu0 0.0
  %385 = vmatpush1.msra.mxu0 0.0
  %386 = vmatprep.subr.mxu0 0.0
  %387 = vmatpush1.msra.mxu0 0.0
  %388 = vmatprep.subr.mxu0 0.0
  %389 = vmatpush1.msra.mxu0 0.0
  %390 = vmatprep.subr.mxu0 0.0
  %391 = vmatpush1.msra.mxu0 0.0
  %392 = vmatprep.subr.mxu0 0.0
  %393 = vmatpush1.msra.mxu0 0.0
  %394 = vmatprep.subr.mxu0 0.0
  %395 = vmatpush1.msra.mxu0 0.0
  %396 = vmatprep.subr.mxu0 0.0
  %397 = vmatpush1.msra.mxu0 0.0
  %398 = vmatprep.subr.mxu0 0.0
  %399 = vmatpush1.msra.mxu0 0.0
  %400 = vmatprep.subr.mxu0 0.0
  %401 = vmatpush1.msra.mxu0 0.0
  %402 = vmatprep.subr.mxu0 0.0
  %403 = vmatpush1.msra.mxu0 0.0
  %404 = vmatprep.subr.mxu0 0.0
  %405 = vmatpush1.msra.mxu0 0.0
  %406 = vmatprep.subr.mxu0 0.0
  %407 = vmatpush1.msra.mxu0 0.0
  %408 = vmatprep.subr.mxu0 0.0
  %409 = vmatpush1.msra.mxu0 0.0
  %410 = vmatprep.subr.mxu0 0.0
  %411 = vmatpush1.msra.mxu0 0.0
  %412 = vmatprep.subr.mxu0 0.0
  %413 = vmatpush1.msra.mxu0 0.0
  %414 = vmatprep.subr.mxu0 0.0
  %415 = vmatpush1.msra.mxu0 0.0
  %416 = vmatprep.mubr.f32.mxu0 0.0
  %417 = vmatmul.mubr.f32.gmra.mrb[0].mxu0 %v71
  %v418 = vpop.f32.mrb[0].mxu0
  %v419 = vadd.f32 %v67, %v418
  %v420 = vpop.f32.mrb[0].mxu0
  %v421 = vadd.f32 %v67, %v420
  %422 = vdwg.mxu0
  %s423 = scalar_lea.vmem %s0, 640
  %v424 = vld [vmem:[%s423] sm:$0xff]
  %v425 = vld [vmem:[%s423 + $0x8] sm:$0xff]
  %v426 = vld [vmem:[%s423 + $0x10] sm:$0xff]
  %v427 = vld [vmem:[%s423 + $0x18] sm:$0xff]
  %v428 = vld [vmem:[%s423 + $0x20] sm:$0xff]
  %v429 = vld [vmem:[%s423 + $0x28] sm:$0xff]
  %v430 = vld [vmem:[%s423 + $0x30] sm:$0xff]
  %v431 = vld [vmem:[%s423 + $0x38] sm:$0xff]
  %v432 = vld [vmem:[%s423 + $0x40] sm:$0xff]
  %v433 = vld [vmem:[%s423 + $0x48] sm:$0xff]
  %v434 = vld [vmem:[%s423 + $0x50] sm:$0xff]
  %v435 = vld [vmem:[%s423 + $0x58] sm:$0xff]
  %v436 = vld [vmem:[%s423 + $0x60] sm:$0xff]
  %v437 = vld [vmem:[%s423 + $0x68] sm:$0xff]
  %v438 = vld [vmem:[%s423 + $0x70] sm:$0xff]
  %v439 = vld [vmem:[%s423 + $0x78] sm:$0xff]
  %v440 = vld [vmem:[%s423 + $0x80] sm:$0xff]
  %v441 = vld [vmem:[%s423 + $0x88] sm:$0xff]
  %v442 = vld [vmem:[%s423 + $0x90] sm:$0xff]
  %v443 = vld [vmem:[%s423 + $0x98] sm:$0xff]
  %v444 = vld [vmem:[%s423 + $0xa0] sm:$0xff]
  %v445 = vld [vmem:[%s423 + $0xa8] sm:$0xff]
  %v446 = vld [vmem:[%s423 + $0xb0] sm:$0xff]
  %v447 = vld [vmem:[%s423 + $0xb8] sm:$0xff]
  %v448 = vld [vmem:[%s423 + $0xc0] sm:$0xff]
  %v449 = vld [vmem:[%s423 + $0xc8] sm:$0xff]
  %v450 = vld [vmem:[%s423 + $0xd0] sm:$0xff]
  %v451 = vld [vmem:[%s423 + $0xd8] sm:$0xff]
  %v452 = vld [vmem:[%s423 + $0xe0] sm:$0xff]
  %v453 = vld [vmem:[%s423 + $0xe8] sm:$0xff]
  %v454 = vld [vmem:[%s423 + $0xf0] sm:$0xff]
  %v455 = vld [vmem:[%s423 + $0xf8] sm:$0xff]
  %v456 = vld [vmem:[%s423 + $0x100] sm:$0xff]
  %v457 = vld [vmem:[%s423 + $0x108] sm:$0xff]
  %v458 = vld [vmem:[%s423 + $0x110] sm:$0xff]
  %v459 = vld [vmem:[%s423 + $0x118] sm:$0xff]
  %v460 = vld [vmem:[%s423 + $0x120] sm:$0x7]
  %v461 = vld [vmem:[%s423 + $0x128] sm:$0x7]
  %v462 = vld [vmem:[%s423 + $0x130] sm:$0x7]
  %v463 = vld [vmem:[%s423 + $0x138] sm:$0x7]
  %v465 = vsel %vm73, %v460, 0
  %v468 = vsel %vm73, %v461, 0
  %v471 = vsel %vm73, %v462, 0
  %v474 = vsel %vm73, %v463, 0
  %476 = vmatprep.subr.mxu0 %v425
  %477 = vmatpush1.msra.mxu0 %v424
  %478 = vmatprep.subr.mxu0 %v429
  %479 = vmatpush1.msra.mxu0 %v428
  %480 = vmatprep.subr.mxu0 %v433
  %481 = vmatpush1.msra.mxu0 %v432
  %482 = vmatprep.subr.mxu0 %v437
  %483 = vmatpush1.msra.mxu0 %v436
  %484 = vmatprep.subr.mxu0 %v441
  %485 = vmatpush1.msra.mxu0 %v440
  %486 = vmatprep.subr.mxu0 %v445
  %487 = vmatpush1.msra.mxu0 %v444
  %488 = vmatprep.subr.mxu0 %v449
  %489 = vmatpush1.msra.mxu0 %v448
  %490 = vmatprep.subr.mxu0 %v453
  %491 = vmatpush1.msra.mxu0 %v452
  %492 = vmatprep.subr.mxu0 %v457
  %493 = vmatpush1.msra.mxu0 %v456
  %494 = vmatprep.subr.mxu0 %v468
  %495 = vmatpush1.msra.mxu0 %v465
  %496 = vmatprep.subr.mxu0 0.0
  %497 = vmatpush1.msra.mxu0 0.0
  %498 = vmatprep.subr.mxu0 0.0
  %499 = vmatpush1.msra.mxu0 0.0
  %500 = vmatprep.subr.mxu0 0.0
  %501 = vmatpush1.msra.mxu0 0.0
  %502 = vmatprep.subr.mxu0 0.0
  %503 = vmatpush1.msra.mxu0 0.0
  %504 = vmatprep.subr.mxu0 0.0
  %505 = vmatpush1.msra.mxu0 0.0
  %506 = vmatprep.subr.mxu0 0.0
  %507 = vmatpush1.msra.mxu0 0.0
  %508 = vmatprep.subr.mxu0 0.0
  %509 = vmatpush1.msra.mxu0 0.0
  %510 = vmatprep.subr.mxu0 0.0
  %511 = vmatpush1.msra.mxu0 0.0
  %512 = vmatprep.subr.mxu0 0.0
  %513 = vmatpush1.msra.mxu0 0.0
  %514 = vmatprep.subr.mxu0 0.0
  %515 = vmatpush1.msra.mxu0 0.0
  %516 = vmatprep.subr.mxu0 0.0
  %517 = vmatpush1.msra.mxu0 0.0
  %518 = vmatprep.subr.mxu0 0.0
  %519 = vmatpush1.msra.mxu0 0.0
  %520 = vmatprep.subr.mxu0 0.0
  %521 = vmatpush1.msra.mxu0 0.0
  %522 = vmatprep.subr.mxu0 0.0
  %523 = vmatpush1.msra.mxu0 0.0
  %524 = vmatprep.subr.mxu0 0.0
  %525 = vmatpush1.msra.mxu0 0.0
  %526 = vmatprep.subr.mxu0 0.0
  %527 = vmatpush1.msra.mxu0 0.0
  %528 = vmatprep.subr.mxu0 0.0
  %529 = vmatpush1.msra.mxu0 0.0
  %530 = vmatprep.subr.mxu0 0.0
  %531 = vmatpush1.msra.mxu0 0.0
  %532 = vmatprep.subr.mxu0 0.0
  %533 = vmatpush1.msra.mxu0 0.0
  %534 = vmatprep.subr.mxu0 0.0
  %535 = vmatpush1.msra.mxu0 0.0
  %536 = vmatprep.subr.mxu0 0.0
  %537 = vmatpush1.msra.mxu0 0.0
  %538 = vmatprep.subr.mxu0 0.0
  %539 = vmatpush1.msra.mxu0 0.0
  %540 = vmatprep.mubr.f32.mxu0 0.0
  %541 = vmatmul.mubr.f32.gmra.mrb[0].mxu0 %v71
  %v542 = vpop.f32.mrb[0].mxu0
  %v543 = vadd.f32 %v67, %v542
  %v544 = vpop.f32.mrb[0].mxu0
  %v545 = vadd.f32 %v67, %v544
  %546 = vdwg.mxu0
  %547 = vmatprep.subr.mxu0 %v427
  %548 = vmatpush1.msra.mxu0 %v426
  %549 = vmatprep.subr.mxu0 %v431
  %550 = vmatpush1.msra.mxu0 %v430
  %551 = vmatprep.subr.mxu0 %v435
  %552 = vmatpush1.msra.mxu0 %v434
  %553 = vmatprep.subr.mxu0 %v439
  %554 = vmatpush1.msra.mxu0 %v438
  %555 = vmatprep.subr.mxu0 %v443
  %556 = vmatpush1.msra.mxu0 %v442
  %557 = vmatprep.subr.mxu0 %v447
  %558 = vmatpush1.msra.mxu0 %v446
  %559 = vmatprep.subr.mxu0 %v451
  %560 = vmatpush1.msra.mxu0 %v450
  %561 = vmatprep.subr.mxu0 %v455
  %562 = vmatpush1.msra.mxu0 %v454
  %563 = vmatprep.subr.mxu0 %v459
  %564 = vmatpush1.msra.mxu0 %v458
  %565 = vmatprep.subr.mxu0 %v474
  %566 = vmatpush1.msra.mxu0 %v471
  %567 = vmatprep.subr.mxu0 0.0
  %568 = vmatpush1.msra.mxu0 0.0
  %569 = vmatprep.subr.mxu0 0.0
  %570 = vmatpush1.msra.mxu0 0.0
  %571 = vmatprep.subr.mxu0 0.0
  %572 = vmatpush1.msra.mxu0 0.0
  %573 = vmatprep.subr.mxu0 0.0
  %574 = vmatpush1.msra.mxu0 0.0
  %575 = vmatprep.subr.mxu0 0.0
  %576 = vmatpush1.msra.mxu0 0.0
  %577 = vmatprep.subr.mxu0 0.0
  %578 = vmatpush1.msra.mxu0 0.0
  %579 = vmatprep.subr.mxu0 0.0
  %580 = vmatpush1.msra.mxu0 0.0
  %581 = vmatprep.subr.mxu0 0.0
  %582 = vmatpush1.msra.mxu0 0.0
  %583 = vmatprep.subr.mxu0 0.0
  %584 = vmatpush1.msra.mxu0 0.0
  %585 = vmatprep.subr.mxu0 0.0
  %586 = vmatpush1.msra.mxu0 0.0
  %587 = vmatprep.subr.mxu0 0.0
  %588 = vmatpush1.msra.mxu0 0.0
  %589 = vmatprep.subr.mxu0 0.0
  %590 = vmatpush1.msra.mxu0 0.0
  %591 = vmatprep.subr.mxu0 0.0
  %592 = vmatpush1.msra.mxu0 0.0
  %593 = vmatprep.subr.mxu0 0.0
  %594 = vmatpush1.msra.mxu0 0.0
  %595 = vmatprep.subr.mxu0 0.0
  %596 = vmatpush1.msra.mxu0 0.0
  %597 = vmatprep.subr.mxu0 0.0
  %598 = vmatpush1.msra.mxu0 0.0
  %599 = vmatprep.subr.mxu0 0.0
  %600 = vmatpush1.msra.mxu0 0.0
  %601 = vmatprep.subr.mxu0 0.0
  %602 = vmatpush1.msra.mxu0 0.0
  %603 = vmatprep.subr.mxu0 0.0
  %604 = vmatpush1.msra.mxu0 0.0
  %605 = vmatprep.subr.mxu0 0.0
  %606 = vmatpush1.msra.mxu0 0.0
  %607 = vmatprep.subr.mxu0 0.0
  %608 = vmatpush1.msra.mxu0 0.0
  %609 = vmatprep.subr.mxu0 0.0
  %610 = vmatpush1.msra.mxu0 0.0
  %611 = vmatprep.mubr.f32.mxu0 0.0
  %612 = vmatmul.mubr.f32.gmra.mrb[0].mxu0 %v71
  %v613 = vpop.f32.mrb[0].mxu0
  %v614 = vadd.f32 %v67, %v613
  %v615 = vpop.f32.mrb[0].mxu0
  %v616 = vadd.f32 %v67, %v615
  %617 = vdwg.mxu0
  %s618 = scalar_lea.vmem %s0, 960
  %v619 = vld [vmem:[%s618] sm:$0xff]
  %v620 = vld [vmem:[%s618 + $0x8] sm:$0xff]
  %v621 = vld [vmem:[%s618 + $0x10] sm:$0xff]
  %v622 = vld [vmem:[%s618 + $0x18] sm:$0xff]
  %v623 = vld [vmem:[%s618 + $0x20] sm:$0xff]
  %v624 = vld [vmem:[%s618 + $0x28] sm:$0xff]
  %v625 = vld [vmem:[%s618 + $0x30] sm:$0xff]
  %v626 = vld [vmem:[%s618 + $0x38] sm:$0xff]
  %v627 = vld [vmem:[%s618 + $0x40] sm:$0xff]
  %v628 = vld [vmem:[%s618 + $0x48] sm:$0xff]
  %v629 = vld [vmem:[%s618 + $0x50] sm:$0xff]
  %v630 = vld [vmem:[%s618 + $0x58] sm:$0xff]
  %v631 = vld [vmem:[%s618 + $0x60] sm:$0xff]
  %v632 = vld [vmem:[%s618 + $0x68] sm:$0xff]
  %v633 = vld [vmem:[%s618 + $0x70] sm:$0xff]
  %v634 = vld [vmem:[%s618 + $0x78] sm:$0xff]
  %v635 = vld [vmem:[%s618 + $0x80] sm:$0xff]
  %v636 = vld [vmem:[%s618 + $0x88] sm:$0xff]
  %v637 = vld [vmem:[%s618 + $0x90] sm:$0xff]
  %v638 = vld [vmem:[%s618 + $0x98] sm:$0xff]
  %v639 = vld [vmem:[%s618 + $0xa0] sm:$0xff]
  %v640 = vld [vmem:[%s618 + $0xa8] sm:$0xff]
  %v641 = vld [vmem:[%s618 + $0xb0] sm:$0xff]
  %v642 = vld [vmem:[%s618 + $0xb8] sm:$0xff]
  %v643 = vld [vmem:[%s618 + $0xc0] sm:$0xff]
  %v644 = vld [vmem:[%s618 + $0xc8] sm:$0xff]
  %v645 = vld [vmem:[%s618 + $0xd0] sm:$0xff]
  %v646 = vld [vmem:[%s618 + $0xd8] sm:$0xff]
  %v647 = vld [vmem:[%s618 + $0xe0] sm:$0xff]
  %v648 = vld [vmem:[%s618 + $0xe8] sm:$0xff]
  %v649 = vld [vmem:[%s618 + $0xf0] sm:$0xff]
  %v650 = vld [vmem:[%s618 + $0xf8] sm:$0xff]
  %v651 = vld [vmem:[%s618 + $0x100] sm:$0xff]
  %v652 = vld [vmem:[%s618 + $0x108] sm:$0xff]
  %v653 = vld [vmem:[%s618 + $0x110] sm:$0xff]
  %v654 = vld [vmem:[%s618 + $0x118] sm:$0xff]
  %v655 = vld [vmem:[%s618 + $0x120] sm:$0x7]
  %v656 = vld [vmem:[%s618 + $0x128] sm:$0x7]
  %v657 = vld [vmem:[%s618 + $0x130] sm:$0x7]
  %v658 = vld [vmem:[%s618 + $0x138] sm:$0x7]
  %v660 = vsel %vm73, %v655, 0
  %v663 = vsel %vm73, %v656, 0
  %v666 = vsel %vm73, %v657, 0
  %v669 = vsel %vm73, %v658, 0
  %671 = vmatprep.subr.mxu0 %v620
  %672 = vmatpush1.msra.mxu0 %v619
  %673 = vmatprep.subr.mxu0 %v624
  %674 = vmatpush1.msra.mxu0 %v623
  %675 = vmatprep.subr.mxu0 %v628
  %676 = vmatpush1.msra.mxu0 %v627
  %677 = vmatprep.subr.mxu0 %v632
  %678 = vmatpush1.msra.mxu0 %v631
  %679 = vmatprep.subr.mxu0 %v636
  %680 = vmatpush1.msra.mxu0 %v635
  %681 = vmatprep.subr.mxu0 %v640
  %682 = vmatpush1.msra.mxu0 %v639
  %683 = vmatprep.subr.mxu0 %v644
  %684 = vmatpush1.msra.mxu0 %v643
  %685 = vmatprep.subr.mxu0 %v648
  %686 = vmatpush1.msra.mxu0 %v647
  %687 = vmatprep.subr.mxu0 %v652
  %688 = vmatpush1.msra.mxu0 %v651
  %689 = vmatprep.subr.mxu0 %v663
  %690 = vmatpush1.msra.mxu0 %v660
  %691 = vmatprep.subr.mxu0 0.0
  %692 = vmatpush1.msra.mxu0 0.0
  %693 = vmatprep.subr.mxu0 0.0
  %694 = vmatpush1.msra.mxu0 0.0
  %695 = vmatprep.subr.mxu0 0.0
  %696 = vmatpush1.msra.mxu0 0.0
  %697 = vmatprep.subr.mxu0 0.0
  %698 = vmatpush1.msra.mxu0 0.0
  %699 = vmatprep.subr.mxu0 0.0
  %700 = vmatpush1.msra.mxu0 0.0
  %701 = vmatprep.subr.mxu0 0.0
  %702 = vmatpush1.msra.mxu0 0.0
  %703 = vmatprep.subr.mxu0 0.0
  %704 = vmatpush1.msra.mxu0 0.0
  %705 = vmatprep.subr.mxu0 0.0
  %706 = vmatpush1.msra.mxu0 0.0
  %707 = vmatprep.subr.mxu0 0.0
  %708 = vmatpush1.msra.mxu0 0.0
  %709 = vmatprep.subr.mxu0 0.0
  %710 = vmatpush1.msra.mxu0 0.0
  %711 = vmatprep.subr.mxu0 0.0
  %712 = vmatpush1.msra.mxu0 0.0
  %713 = vmatprep.subr.mxu0 0.0
  %714 = vmatpush1.msra.mxu0 0.0
  %715 = vmatprep.subr.mxu0 0.0
  %716 = vmatpush1.msra.mxu0 0.0
  %717 = vmatprep.subr.mxu0 0.0
  %718 = vmatpush1.msra.mxu0 0.0
  %719 = vmatprep.subr.mxu0 0.0
  %720 = vmatpush1.msra.mxu0 0.0
  %721 = vmatprep.subr.mxu0 0.0
  %722 = vmatpush1.msra.mxu0 0.0
  %723 = vmatprep.subr.mxu0 0.0
  %724 = vmatpush1.msra.mxu0 0.0
  %725 = vmatprep.subr.mxu0 0.0
  %726 = vmatpush1.msra.mxu0 0.0
  %727 = vmatprep.subr.mxu0 0.0
  %728 = vmatpush1.msra.mxu0 0.0
  %729 = vmatprep.subr.mxu0 0.0
  %730 = vmatpush1.msra.mxu0 0.0
  %731 = vmatprep.subr.mxu0 0.0
  %732 = vmatpush1.msra.mxu0 0.0
  %733 = vmatprep.subr.mxu0 0.0
  %734 = vmatpush1.msra.mxu0 0.0
  %735 = vmatprep.mubr.f32.mxu0 0.0
  %736 = vmatmul.mubr.f32.gmra.mrb[0].mxu0 %v71
  %v737 = vpop.f32.mrb[0].mxu0
  %v738 = vadd.f32 %v67, %v737
  %v739 = vpop.f32.mrb[0].mxu0
  %v740 = vadd.f32 %v67, %v739
  %741 = vdwg.mxu0
  %742 = vmatprep.subr.mxu0 %v622
  %743 = vmatpush1.msra.mxu0 %v621
  %744 = vmatprep.subr.mxu0 %v626
  %745 = vmatpush1.msra.mxu0 %v625
  %746 = vmatprep.subr.mxu0 %v630
  %747 = vmatpush1.msra.mxu0 %v629
  %748 = vmatprep.subr.mxu0 %v634
  %749 = vmatpush1.msra.mxu0 %v633
  %750 = vmatprep.subr.mxu0 %v638
  %751 = vmatpush1.msra.mxu0 %v637
  %752 = vmatprep.subr.mxu0 %v642
  %753 = vmatpush1.msra.mxu0 %v641
  %754 = vmatprep.subr.mxu0 %v646
  %755 = vmatpush1.msra.mxu0 %v645
  %756 = vmatprep.subr.mxu0 %v650
  %757 = vmatpush1.msra.mxu0 %v649
  %758 = vmatprep.subr.mxu0 %v654
  %759 = vmatpush1.msra.mxu0 %v653
  %760 = vmatprep.subr.mxu0 %v669
  %761 = vmatpush1.msra.mxu0 %v666
  %762 = vmatprep.subr.mxu0 0.0
  %763 = vmatpush1.msra.mxu0 0.0
  %764 = vmatprep.subr.mxu0 0.0
  %765 = vmatpush1.msra.mxu0 0.0
  %766 = vmatprep.subr.mxu0 0.0
  %767 = vmatpush1.msra.mxu0 0.0
  %768 = vmatprep.subr.mxu0 0.0
  %769 = vmatpush1.msra.mxu0 0.0
  %770 = vmatprep.subr.mxu0 0.0
  %771 = vmatpush1.msra.mxu0 0.0
  %772 = vmatprep.subr.mxu0 0.0
  %773 = vmatpush1.msra.mxu0 0.0
  %774 = vmatprep.subr.mxu0 0.0
  %775 = vmatpush1.msra.mxu0 0.0
  %776 = vmatprep.subr.mxu0 0.0
  %777 = vmatpush1.msra.mxu0 0.0
  %778 = vmatprep.subr.mxu0 0.0
  %779 = vmatpush1.msra.mxu0 0.0
  %780 = vmatprep.subr.mxu0 0.0
  %781 = vmatpush1.msra.mxu0 0.0
  %782 = vmatprep.subr.mxu0 0.0
  %783 = vmatpush1.msra.mxu0 0.0
  %784 = vmatprep.subr.mxu0 0.0
  %785 = vmatpush1.msra.mxu0 0.0
  %786 = vmatprep.subr.mxu0 0.0
  %787 = vmatpush1.msra.mxu0 0.0
  %788 = vmatprep.subr.mxu0 0.0
  %789 = vmatpush1.msra.mxu0 0.0
  %790 = vmatprep.subr.mxu0 0.0
  %791 = vmatpush1.msra.mxu0 0.0
  %792 = vmatprep.subr.mxu0 0.0
  %793 = vmatpush1.msra.mxu0 0.0
  %794 = vmatprep.subr.mxu0 0.0
  %795 = vmatpush1.msra.mxu0 0.0
  %796 = vmatprep.subr.mxu0 0.0
  %797 = vmatpush1.msra.mxu0 0.0
  %798 = vmatprep.subr.mxu0 0.0
  %799 = vmatpush1.msra.mxu0 0.0
  %800 = vmatprep.subr.mxu0 0.0
  %801 = vmatpush1.msra.mxu0 0.0
  %802 = vmatprep.subr.mxu0 0.0
  %803 = vmatpush1.msra.mxu0 0.0
  %804 = vmatprep.subr.mxu0 0.0
  %805 = vmatpush1.msra.mxu0 0.0
  %806 = vmatprep.mubr.f32.mxu0 0.0
  %807 = vmatmul.mubr.f32.gmra.mrb[0].mxu0 %v71
  %v808 = vpop.f32.mrb[0].mxu0
  %v809 = vadd.f32 %v67, %v808
  %v810 = vpop.f32.mrb[0].mxu0
  %v811 = vadd.f32 %v67, %v810
  %812 = vdwg.mxu0
  %v813 = vadd.f32 %v153, %v348
  %v814 = vadd.f32 %v155, %v350
  %v815 = vadd.f32 %v224, %v419
  %v816 = vadd.f32 %v226, %v421
  %v817 = vadd.f32 %v813, %v543
  %v818 = vadd.f32 %v814, %v545
  %v819 = vadd.f32 %v815, %v614
  %v820 = vadd.f32 %v816, %v616
  %v821 = vadd.f32 %v817, %v738
  %v822 = vadd.f32 %v818, %v740
  %v823 = vadd.f32 %v819, %v809
  %v824 = vadd.f32 %v820, %v811
  %vm825 = vcmask 1045504
  %v826 = vsel %vm825, %v821, 0.0
  %v827 = vsel %vm825, %v822, 0.0
  %v828 = vadd.f32 %v826, %v827
  %v829 = vsel %vm825, %v823, 0.0
  %v830 = vadd.f32 %v828, %v829
  %vm831 = vcmask 62464
  %v832 = vsel %vm831, %v824, 0.0
  %v833 = vadd.f32 %v830, %v832
  %834 = vadd.xlane.f32.xlu0 %v833
  %v835 = vpop.xlane.xlu0 %834
  %v836 = vrcp.pop 1568.0
  %v837 = vmul.f32 %v835, %v836
  %v838 = vmul.f32 %v153, %v153
  %v839 = vmul.f32 %v155, %v155
  %v840 = vmul.f32 %v224, %v224
  %v841 = vmul.f32 %v226, %v226
  %v842 = vmul.f32 %v348, %v348
  %v843 = vmul.f32 %v350, %v350
  %v844 = vmul.f32 %v419, %v419
  %v845 = vmul.f32 %v421, %v421
  %v846 = vadd.f32 %v838, %v842
  %v847 = vadd.f32 %v839, %v843
  %v848 = vadd.f32 %v840, %v844
  %v849 = vadd.f32 %v841, %v845
  %v850 = vmul.f32 %v543, %v543
  %v851 = vmul.f32 %v545, %v545
  %v852 = vmul.f32 %v614, %v614
  %v853 = vmul.f32 %v616, %v616
  %v854 = vadd.f32 %v846, %v850
  %v855 = vadd.f32 %v847, %v851
  %v856 = vadd.f32 %v848, %v852
  %v857 = vadd.f32 %v849, %v853
  %v858 = vmul.f32 %v738, %v738
  %v859 = vmul.f32 %v740, %v740
  %v860 = vmul.f32 %v809, %v809
  %v861 = vmul.f32 %v811, %v811
  %v862 = vadd.f32 %v854, %v858
  %v863 = vadd.f32 %v855, %v859
  %v864 = vadd.f32 %v856, %v860
  %v865 = vadd.f32 %v857, %v861
  %v866 = vsel %vm825, %v862, 0.0
  %v867 = vsel %vm825, %v863, 0.0
  %v868 = vadd.f32 %v866, %v867
  %v869 = vsel %vm825, %v864, 0.0
  %v870 = vadd.f32 %v868, %v869
  %v871 = vsel %vm831, %v865, 0.0
  %v872 = vadd.f32 %v870, %v871
  %873 = vadd.xlane.f32.xlu0 %v872
  %v874 = vpop.xlane.xlu0 %873
  %v875 = vmul.f32 %v874, %v836
  %v876 = vmul.f32 %v837, %v837
  %v877 = vsub.f32 %v875, %v876
  %v878 = vadd.f32 %v877, 1e-05
  %v879 = vrsqrt.pop %v878
  %v880 = vmul.f32 %v22, %v879
  %v881 = vmul.f32 %v837, %v880
  %v882 = vsub.f32 %v23, %v881
  %884 = vset.pattern.permute.xlu0 0
  %885 = vperm.xlu0 %884, %v880
  %v886 = vpop.permute.xlu0 %885
  %v888 = vmul.f32 %v153, %v886
  %v889 = vmul.f32 %v155, %v886
  %v890 = vmul.f32 %v224, %v886
  %v891 = vmul.f32 %v226, %v886
  %893 = vset.pattern.permute.xlu0 0
  %894 = vperm.xlu0 %893, %v882
  %v895 = vpop.permute.xlu0 %894
  %v897 = vadd.f32 %v888, %v895
  %v898 = vadd.f32 %v889, %v895
  %v899 = vadd.f32 %v890, %v895
  %v900 = vadd.f32 %v891, %v895
  %v901 = vmax.f32 %v897, 0.0
  %v902 = vmax.f32 %v898, 0.0
  %v903 = vmax.f32 %v899, 0.0
  %v904 = vmax.f32 %v900, 0.0
  %v905 = vmul.f32 %v348, %v886
  %v906 = vmul.f32 %v350, %v886
  %v907 = vmul.f32 %v419, %v886
  %v908 = vmul.f32 %v421, %v886
  %v909 = vadd.f32 %v905, %v895
  %v910 = vadd.f32 %v906, %v895
  %v911 = vadd.f32 %v907, %v895
  %v912 = vadd.f32 %v908, %v895
  %v913 = vmax.f32 %v909, 0.0
  %v914 = vmax.f32 %v910, 0.0
  %v915 = vmax.f32 %v911, 0.0
  %v916 = vmax.f32 %v912, 0.0
  %v917 = vmul.f32 %v543, %v886
  %v918 = vmul.f32 %v545, %v886
  %v919 = vmul.f32 %v614, %v886
  %v920 = vmul.f32 %v616, %v886
  %v921 = vadd.f32 %v917, %v895
  %v922 = vadd.f32 %v918, %v895
  %v923 = vadd.f32 %v919, %v895
  %v924 = vadd.f32 %v920, %v895
  %v925 = vmax.f32 %v921, 0.0
  %v926 = vmax.f32 %v922, 0.0
  %v927 = vmax.f32 %v923, 0.0
  %v928 = vmax.f32 %v924, 0.0
  %v929 = vmul.f32 %v738, %v886
  %v930 = vmul.f32 %v740, %v886
  %v931 = vmul.f32 %v809, %v886
  %v932 = vmul.f32 %v811, %v886
  %v933 = vadd.f32 %v929, %v895
  %v934 = vadd.f32 %v930, %v895
  %v935 = vadd.f32 %v931, %v895
  %v936 = vadd.f32 %v932, %v895
  %v937 = vmax.f32 %v933, 0.0
  %v938 = vmax.f32 %v934, 0.0
  %v939 = vmax.f32 %v935, 0.0
  %v940 = vmax.f32 %v936, 0.0
  %v941 = vmax.f32 %v901, %v913
  %v942 = vmax.f32 %v902, %v914
  %v943 = vmax.f32 %v903, %v915
  %v944 = vmax.f32 %v904, %v916
  %v945 = vmax.f32 %v925, %v937
  %v946 = vmax.f32 %v926, %v938
  %v947 = vmax.f32 %v927, %v939
  %v948 = vmax.f32 %v928, %v940
  %v949 = vmax.f32 %v941, %v945
  %v950 = vmax.f32 %v942, %v946
  %v951 = vmax.f32 %v943, %v947
  %v952 = vmax.f32 %v944, %v948
  %953 = vst [vmem:[%s5] sm:$0x3f] %v949
  %954 = vst [vmem:[%s5 + $0x8] sm:$0x3f] %v950
  %955 = vst [vmem:[%s5 + $0x10] sm:$0x3f] %v951
  %956 = vst.msk [vmem:[%s5 + $0x18] sm:$0x3f] %vm831, %v952
  // Predicated region
  $region22: #{lenet_bn_forward.2} parent=0 // pred_check
    _
  $region23: #{lenet_bn_forward.2} parent=0 // pred_check_branch
    %958 = sbr.rel (0) target = $region25
  $region24: #{lenet_bn_forward.2} parent=0 // pred_region
    _
  $region25: #{lenet_bn_forward.2} parent=0 // pred_fallthru
    _
  // Predicated region
  $region26: #{lenet_bn_forward.2} parent=0 // pred_check
    _
  $region27: #{lenet_bn_forward.2} parent=0 // pred_check_branch
    %960 = sbr.rel (0) target = $region29
  $region28: #{lenet_bn_forward.2} parent=0 // pred_region
    _
  $region29: #{lenet_bn_forward.2} parent=0 // pred_fallthru
    _

// kernel: lenet_bn_forward.3
$region0: #{lenet_bn_forward.3}
  #allocation0 [shape = 'u32[]', space=smem, size = 0x4, offset = 0x4, fixed_abs, tag = 'smem constant byte address 0x4 - core index']
  #allocation1 [shape = 'u32[144,128]{1,0:T(1,128)}', space=vmem, size = 0x12000, scoped, tag = 'internal scratch']
  #allocation2 [shape = 'f32[2,400]{1,0:T(2,128)}', space=vmem, size = 0x1000, scoped, tag = 'scratch operand']
  %s0 = inlined_call_operand.vmem [shape: f32[4,150,50], index: 0, kind: input, shape index: {}]
  %s1 = inlined_call_operand.vmem [shape: f32[16,150], index: 1, kind: input, shape index: {}]
  %s2 = inlined_call_operand.vmem [shape: f32[16,1], index: 2, kind: input, shape index: {}]
  %s3 = inlined_call_operand.vmem [shape: f32[16,1], index: 3, kind: input, shape index: {}]
  %s4 = inlined_call_operand.vmem [shape: f32[16,1], index: 4, kind: input, shape index: {}]
  %s5 = inlined_call_operand.vmem [shape: f32[400,120], index: 5, kind: input, shape index: {}]
  %s6 = inlined_call_operand.vmem [shape: f32[1,120], index: 6, kind: input, shape index: {}]
  %s7 = inlined_call_operand.vmem [shape: f32[1,120], index: 7, kind: input, shape index: {}]
  %s8 = inlined_call_operand.vmem [shape: f32[1,120], index: 8, kind: input, shape index: {}]
  %s9 = inlined_call_operand.vmem [shape: f32[120,84], index: 9, kind: input, shape index: {}]
  %s10 = inlined_call_operand.vmem [shape: f32[1,84], index: 10, kind: input, shape index: {}]
  %s11 = inlined_call_operand.vmem [shape: f32[84,10], index: 11, kind: input, shape index: {}]
  %s12 = inlined_call_operand.vmem [shape: f32[1,10], index: 12, kind: input, shape index: {}]
  %s13 = inlined_call_operand.hbm [shape: f32[2,10], index: 13, kind: output, shape index: {}]
  %s14 = sld [smem:[#allocation0]]
  $region62: #{lenet_bn_forward.3} parent=0
    _
  %s16 = ssub.s32 1, %s14
  %s17 = scalar_select 0, %s16, %s14
  $region1: #{lenet_bn_forward.3} parent=0
    #allocation3 [shape = 'u8[1024]{0}', space=vmem, size = 0x400, scoped, tag = 'output window, operand 0, single buffered']
    #allocation4 [shape = 's32[1]{0}', space=sflag, size = 0x4, scoped, tag = 'scoped memory for lenet_bn_forward.3']
    %18 = vsyncpa [#allocation4], 0
    // Predicated region
    $region2: #{lenet_bn_forward.3} parent=1 // pred_check
      _
    $region3: #{lenet_bn_forward.3} parent=1 // pred_check_branch
      %20 = sbr.rel (0) target = $region5
    $region4: #{lenet_bn_forward.3} parent=1 // pred_region
      _
    $region5: #{lenet_bn_forward.3} parent=1 // pred_fallthru
      _
    // Predicated region
    $region6: #{lenet_bn_forward.3} parent=1 // pred_check
      _
    $region7: #{lenet_bn_forward.3} parent=1 // pred_check_branch
      %22 = sbr.rel (0) target = $region9
    $region8: #{lenet_bn_forward.3} parent=1 // pred_region
      _
    $region9: #{lenet_bn_forward.3} parent=1 // pred_fallthru
      _
    // Predicated region
    $region10: #{lenet_bn_forward.3} parent=1 // pred_check
      _
    $region11: #{lenet_bn_forward.3} parent=1 // pred_check_branch
      %24 = sbr.rel (0) target = $region13
    $region12: #{lenet_bn_forward.3} parent=1 // pred_region
      _
    $region13: #{lenet_bn_forward.3} parent=1 // pred_fallthru
      _
    // Predicated region
    $region14: #{lenet_bn_forward.3} parent=1 // pred_check
      _
    $region15: #{lenet_bn_forward.3} parent=1 // pred_check_branch
      %26 = sbr.rel (0) target = $region17
    $region16: #{lenet_bn_forward.3} parent=1 // pred_region
      _
    $region17: #{lenet_bn_forward.3} parent=1 // pred_fallthru
      _
    // Predicated region
    $region18: #{lenet_bn_forward.3} parent=1 // pred_check
      _
    $region19: #{lenet_bn_forward.3} parent=1 // pred_check_branch
      %28 = sbr.rel (0) target = $region21
    $region20: #{lenet_bn_forward.3} parent=1 // pred_region
      _
    $region21: #{lenet_bn_forward.3} parent=1 // pred_fallthru
      _
    // Predicated region
    $region22: #{lenet_bn_forward.3} parent=1 // pred_check
      _
    $region23: #{lenet_bn_forward.3} parent=1 // pred_check_branch
      %30 = sbr.rel (0) target = $region25
    $region24: #{lenet_bn_forward.3} parent=1 // pred_region
      _
    $region25: #{lenet_bn_forward.3} parent=1 // pred_fallthru
      _
    // Predicated region
    $region26: #{lenet_bn_forward.3} parent=1 // pred_check
      _
    $region27: #{lenet_bn_forward.3} parent=1 // pred_check_branch
      %32 = sbr.rel (0) target = $region29
    $region28: #{lenet_bn_forward.3} parent=1 // pred_region
      _
    $region29: #{lenet_bn_forward.3} parent=1 // pred_fallthru
      _
    // Predicated region
    $region30: #{lenet_bn_forward.3} parent=1 // pred_check
      _
    $region31: #{lenet_bn_forward.3} parent=1 // pred_check_branch
      %34 = sbr.rel (0) target = $region33
    $region32: #{lenet_bn_forward.3} parent=1 // pred_region
      _
    $region33: #{lenet_bn_forward.3} parent=1 // pred_fallthru
      _
    // Predicated region
    $region34: #{lenet_bn_forward.3} parent=1 // pred_check
      _
    $region35: #{lenet_bn_forward.3} parent=1 // pred_check_branch
      %36 = sbr.rel (0) target = $region37
    $region36: #{lenet_bn_forward.3} parent=1 // pred_region
      _
    $region37: #{lenet_bn_forward.3} parent=1 // pred_fallthru
      _
    // Predicated region
    $region38: #{lenet_bn_forward.3} parent=1 // pred_check
      _
    $region39: #{lenet_bn_forward.3} parent=1 // pred_check_branch
      %38 = sbr.rel (0) target = $region41
    $region40: #{lenet_bn_forward.3} parent=1 // pred_region
      _
    $region41: #{lenet_bn_forward.3} parent=1 // pred_fallthru
      _
    // Predicated region
    $region42: #{lenet_bn_forward.3} parent=1 // pred_check
      _
    $region43: #{lenet_bn_forward.3} parent=1 // pred_check_branch
      %40 = sbr.rel (0) target = $region45
    $region44: #{lenet_bn_forward.3} parent=1 // pred_region
      _
    $region45: #{lenet_bn_forward.3} parent=1 // pred_fallthru
      _
    // Predicated region
    $region46: #{lenet_bn_forward.3} parent=1 // pred_check
      _
    $region47: #{lenet_bn_forward.3} parent=1 // pred_check_branch
      %42 = sbr.rel (0) target = $region49
    $region48: #{lenet_bn_forward.3} parent=1 // pred_region
      _
    $region49: #{lenet_bn_forward.3} parent=1 // pred_fallthru
      _
    // Predicated region
    $region50: #{lenet_bn_forward.3} parent=1 // pred_check
      _
    $region51: #{lenet_bn_forward.3} parent=1 // pred_check_branch
      %44 = sbr.rel (0) target = $region53
    $region52: #{lenet_bn_forward.3} parent=1 // pred_region
      _
    $region53: #{lenet_bn_forward.3} parent=1 // pred_fallthru
      _
    %v45 = vld [vmem:[%s1] sm:$0xff]
    %v46 = vld [vmem:[%s1 + $0x8] sm:$0xff]
    %v47 = vld [vmem:[%s1 + $0x10] sm:$0xff]
    %v48 = vld [vmem:[%s1 + $0x18] sm:$0xff]
    %v49 = vld [vmem:[%s2] sm:$0xff]
    %v50 = vld [vmem:[%s2 + $0x8] sm:$0xff]
    %v51 = vld [vmem:[%s3] sm:$0xff]
    %v52 = vld [vmem:[%s3 + $0x8] sm:$0xff]
    %v53 = vld [vmem:[%s4] sm:$0xff]
    %v54 = vld [vmem:[%s4 + $0x8] sm:$0xff]
    %v55 = vld [vmem:[%s0] sm:$0xff]
    %v56 = vld [vmem:[%s0 + $0x8] sm:$0xff]
    %v57 = vld [vmem:[%s0 + $0x10] sm:$0xff]
    %v58 = vld [vmem:[%s0 + $0x18] sm:$0xff]
    %v59 = vld [vmem:[%s0 + $0x20] sm:$0xff]
    %v60 = vld [vmem:[%s0 + $0x28] sm:$0xff]
    %v61 = vld [vmem:[%s0 + $0x30] sm:$0xff]
    %v62 = vld [vmem:[%s0 + $0x38] sm:$0xff]
    %v63 = vld [vmem:[%s0 + $0x40] sm:$0xff]
    %v64 = vld [vmem:[%s0 + $0x48] sm:$0xff]
    %v65 = vld [vmem:[%s0 + $0x50] sm:$0xff]
    %v66 = vld [vmem:[%s0 + $0x58] sm:$0xff]
    %v67 = vld [vmem:[%s0 + $0x60] sm:$0xff]
    %v68 = vld [vmem:[%s0 + $0x68] sm:$0xff]
    %v69 = vld [vmem:[%s0 + $0x70] sm:$0xff]
    %v70 = vld [vmem:[%s0 + $0x78] sm:$0xff]
    %v71 = vld [vmem:[%s0 + $0x80] sm:$0xff]
    %v72 = vld [vmem:[%s0 + $0x88] sm:$0xff]
    %v73 = vld [vmem:[%s0 + $0x90] sm:$0x3f]
    %75 = vset.pattern.permute.xlu0 0
    %76 = vperm.xlu0 %75, %v49
    %v77 = vpop.permute.xlu0 %76
    %80 = vset.pattern.permute.xlu0 0
    %81 = vperm.xlu0 %80, %v50
    %v82 = vpop.permute.xlu0 %81
    %vm84 = vcmask 179200
    %v86 = vsel %vm84, %v46, 0
    %v89 = vsel %vm84, %v48, 0
    %vm91 = vcmask 1045504
    %v93 = vsel %vm91, %v73, 0
    %95 = vmatprep.subr.mxu0 0.0
    %96 = vmatpush1.msra.mxu0 %v55
    %97 = vmatprep.subr.mxu0 0.0
    %98 = vmatpush1.msra.mxu0 %v56
    %99 = vmatprep.subr.mxu0 0.0
    %100 = vmatpush1.msra.mxu0 %v57
    %101 = vmatprep.subr.mxu0 0.0
    %102 = vmatpush1.msra.mxu0 %v58
    %103 = vmatprep.subr.mxu0 0.0
    %104 = vmatpush1.msra.mxu0 %v59
    %105 = vmatprep.subr.mxu0 0.0
    %106 = vmatpush1.msra.mxu0 %v60
    %107 = vmatprep.subr.mxu0 0.0
    %108 = vmatpush1.msra.mxu0 %v61
    %109 = vmatprep.subr.mxu0 0.0
    %110 = vmatpush1.msra.mxu0 %v62
    %111 = vmatprep.subr.mxu0 0.0
    %112 = vmatpush1.msra.mxu0 %v63
    %113 = vmatprep.subr.mxu0 0.0
    %114 = vmatpush1.msra.mxu0 %v64
    %115 = vmatprep.subr.mxu0 0.0
    %116 = vmatpush1.msra.mxu0 %v65
    %117 = vmatprep.subr.mxu0 0.0
    %118 = vmatpush1.msra.mxu0 %v66
    %119 = vmatprep.subr.mxu0 0.0
    %120 = vmatpush1.msra.mxu0 %v67
    %121 = vmatprep.subr.mxu0 0.0
    %122 = vmatpush1.msra.mxu0 %v68
    %123 = vmatprep.subr.mxu0 0.0
    %124 = vmatpush1.msra.mxu0 %v69
    %125 = vmatprep.subr.mxu0 0.0
    %126 = vmatpush1.msra.mxu0 %v70
    %127 = vmatprep.subr.mxu0 0.0
    %128 = vmatpush1.msra.mxu0 %v71
    %129 = vmatprep.subr.mxu0 0.0
    %130 = vmatpush1.msra.mxu0 %v72
    %131 = vmatprep.subr.mxu0 0.0
    %132 = vmatpush1.msra.mxu0 %v93
    %133 = vmatprep.subr.mxu0 0.0
    %134 = vmatpush1.msra.mxu0 0.0
    %135 = vmatprep.subr.mxu0 0.0
    %136 = vmatpush1.msra.mxu0 0.0
    %137 = vmatprep.subr.mxu0 0.0
    %138 = vmatpush1.msra.mxu0 0.0
    %139 = vmatprep.subr.mxu0 0.0
    %140 = vmatpush1.msra.mxu0 0.0
    %141 = vmatprep.subr.mxu0 0.0
    %142 = vmatpush1.msra.mxu0 0.0
    %143 = vmatprep.subr.mxu0 0.0
    %144 = vmatpush1.msra.mxu0 0.0
    %145 = vmatprep.subr.mxu0 0.0
    %146 = vmatpush1.msra.mxu0 0.0
    %147 = vmatprep.subr.mxu0 0.0
    %148 = vmatpush1.msra.mxu0 0.0
    %149 = vmatprep.subr.mxu0 0.0
    %150 = vmatpush1.msra.mxu0 0.0
    %151 = vmatprep.subr.mxu0 0.0
    %152 = vmatpush1.msra.mxu0 0.0
    %153 = vmatprep.subr.mxu0 0.0
    %154 = vmatpush1.msra.mxu0 0.0
    %155 = vmatprep.subr.mxu0 0.0
    %156 = vmatpush1.msra.mxu0 0.0
    %157 = vmatprep.subr.mxu0 0.0
    %158 = vmatpush1.msra.mxu0 0.0
    %159 = vmatprep.mubr.f32.mxu0 %v86
    %160 = vmatmul.mubr.f32.gmra.mrb[0].mxu0 %v45
    %v161 = vpop.f32.mrb[0].mxu0
    %v162 = vadd.f32 %v77, %v161
    %v163 = vpop.f32.mrb[0].mxu0
    %164 = vmatprep.mubr.f32.mxu0 %v89
    %165 = vmatmul.mubr.f32.gmra.mrb[0].mxu0 %v47
    %v166 = vpop.f32.mrb[0].mxu0
    %v167 = vadd.f32 %v82, %v166
    %v168 = vpop.f32.mrb[0].mxu0
    %169 = vdwg.mxu0
    %s170 = scalar_lea.vmem %s0, 152
    %v171 = vld [vmem:[%s170] sm:$0xff]
    %v172 = vld [vmem:[%s170 + $0x8] sm:$0xff]
    %v173 = vld [vmem:[%s170 + $0x10] sm:$0xff]
    %v174 = vld [vmem:[%s170 + $0x18] sm:$0xff]
    %v175 = vld [vmem:[%s170 + $0x20] sm:$0xff]
    %v176 = vld [vmem:[%s170 + $0x28] sm:$0xff]
    %v177 = vld [vmem:[%s170 + $0x30] sm:$0xff]
    %v178 = vld [vmem:[%s170 + $0x38] sm:$0xff]
    %v179 = vld [vmem:[%s170 + $0x40] sm:$0xff]
    %v180 = vld [vmem:[%s170 + $0x48] sm:$0xff]
    %v181 = vld [vmem:[%s170 + $0x50] sm:$0xff]
    %v182 = vld [vmem:[%s170 + $0x58] sm:$0xff]
    %v183 = vld [vmem:[%s170 + $0x60] sm:$0xff]
    %v184 = vld [vmem:[%s170 + $0x68] sm:$0xff]
    %v185 = vld [vmem:[%s170 + $0x70] sm:$0xff]
    %v186 = vld [vmem:[%s170 + $0x78] sm:$0xff]
    %v187 = vld [vmem:[%s170 + $0x80] sm:$0xff]
    %v188 = vld [vmem:[%s170 + $0x88] sm:$0xff]
    %v189 = vld [vmem:[%s170 + $0x90] sm:$0x3f]
    %v191 = vsel %vm91, %v189, 0
    %193 = vmatprep.subr.mxu0 0.0
    %194 = vmatpush1.msra.mxu0 %v171
    %195 = vmatprep.subr.mxu0 0.0
    %196 = vmatpush1.msra.mxu0 %v172
    %197 = vmatprep.subr.mxu0 0.0
    %198 = vmatpush1.msra.mxu0 %v173
    %199 = vmatprep.subr.mxu0 0.0
    %200 = vmatpush1.msra.mxu0 %v174
    %201 = vmatprep.subr.mxu0 0.0
    %202 = vmatpush1.msra.mxu0 %v175
    %203 = vmatprep.subr.mxu0 0.0
    %204 = vmatpush1.msra.mxu0 %v176
    %205 = vmatprep.subr.mxu0 0.0
    %206 = vmatpush1.msra.mxu0 %v177
    %207 = vmatprep.subr.mxu0 0.0
    %208 = vmatpush1.msra.mxu0 %v178
    %209 = vmatprep.subr.mxu0 0.0
    %210 = vmatpush1.msra.mxu0 %v179
    %211 = vmatprep.subr.mxu0 0.0
    %212 = vmatpush1.msra.mxu0 %v180
    %213 = vmatprep.subr.mxu0 0.0
    %214 = vmatpush1.msra.mxu0 %v181
    %215 = vmatprep.subr.mxu0 0.0
    %216 = vmatpush1.msra.mxu0 %v182
    %217 = vmatprep.subr.mxu0 0.0
    %218 = vmatpush1.msra.mxu0 %v183
    %219 = vmatprep.subr.mxu0 0.0
    %220 = vmatpush1.msra.mxu0 %v184
    %221 = vmatprep.subr.mxu0 0.0
    %222 = vmatpush1.msra.mxu0 %v185
    %223 = vmatprep.subr.mxu0 0.0
    %224 = vmatpush1.msra.mxu0 %v186
    %225 = vmatprep.subr.mxu0 0.0
    %226 = vmatpush1.msra.mxu0 %v187
    %227 = vmatprep.subr.mxu0 0.0
    %228 = vmatpush1.msra.mxu0 %v188
    %229 = vmatprep.subr.mxu0 0.0
    %230 = vmatpush1.msra.mxu0 %v191
    %231 = vmatprep.subr.mxu0 0.0
    %232 = vmatpush1.msra.mxu0 0.0
    %233 = vmatprep.subr.mxu0 0.0
    %234 = vmatpush1.msra.mxu0 0.0
    %235 = vmatprep.subr.mxu0 0.0
    %236 = vmatpush1.msra.mxu0 0.0
    %237 = vmatprep.subr.mxu0 0.0
    %238 = vmatpush1.msra.mxu0 0.0
    %239 = vmatprep.subr.mxu0 0.0
    %240 = vmatpush1.msra.mxu0 0.0
    %241 = vmatprep.subr.mxu0 0.0
    %242 = vmatpush1.msra.mxu0 0.0
    %243 = vmatprep.subr.mxu0 0.0
    %244 = vmatpush1.msra.mxu0 0.0
    %245 = vmatprep.subr.mxu0 0.0
    %246 = vmatpush1.msra.mxu0 0.0
    %247 = vmatprep.subr.mxu0 0.0
    %248 = vmatpush1.msra.mxu0 0.0
    %249 = vmatprep.subr.mxu0 0.0
    %250 = vmatpush1.msra.mxu0 0.0
    %251 = vmatprep.subr.mxu0 0.0
    %252 = vmatpush1.msra.mxu0 0.0
    %253 = vmatprep.subr.mxu0 0.0
    %254 = vmatpush1.msra.mxu0 0.0
    %255 = vmatprep.subr.mxu0 0.0
    %256 = vmatpush1.msra.mxu0 0.0
    %257 = vmatprep.mubr.f32.mxu0 %v86
    %258 = vmatmul.mubr.f32.gmra.mrb[0].mxu0 %v45
    %v259 = vpop.f32.mrb[0].mxu0
    %v260 = vadd.f32 %v77, %v259
    %v261 = vpop.f32.mrb[0].mxu0
    %262 = vmatprep.mubr.f32.mxu0 %v89
    %263 = vmatmul.mubr.f32.gmra.mrb[0].mxu0 %v47
    %v264 = vpop.f32.mrb[0].mxu0
    %v265 = vadd.f32 %v82, %v264
    %v266 = vpop.f32.mrb[0].mxu0
    %267 = vdwg.mxu0
    %s268 = scalar_lea.vmem %s0, 304
    %v269 = vld [vmem:[%s268] sm:$0xff]
    %v270 = vld [vmem:[%s268 + $0x8] sm:$0xff]
    %v271 = vld [vmem:[%s268 + $0x10] sm:$0xff]
    %v272 = vld [vmem:[%s268 + $0x18] sm:$0xff]
    %v273 = vld [vmem:[%s268 + $0x20] sm:$0xff]
    %v274 = vld [vmem:[%s268 + $0x28] sm:$0xff]
    %v275 = vld [vmem:[%s268 + $0x30] sm:$0xff]
    %v276 = vld [vmem:[%s268 + $0x38] sm:$0xff]
    %v277 = vld [vmem:[%s268 + $0x40] sm:$0xff]
    %v278 = vld [vmem:[%s268 + $0x48] sm:$0xff]
    %v279 = vld [vmem:[%s268 + $0x50] sm:$0xff]
    %v280 = vld [vmem:[%s268 + $0x58] sm:$0xff]
    %v281 = vld [vmem:[%s268 + $0x60] sm:$0xff]
    %v282 = vld [vmem:[%s268 + $0x68] sm:$0xff]
    %v283 = vld [vmem:[%s268 + $0x70] sm:$0xff]
    %v284 = vld [vmem:[%s268 + $0x78] sm:$0xff]
    %v285 = vld [vmem:[%s268 + $0x80] sm:$0xff]
    %v286 = vld [vmem:[%s268 + $0x88] sm:$0xff]
    %v287 = vld [vmem:[%s268 + $0x90] sm:$0x3f]
    %v289 = vsel %vm91, %v287, 0
    %291 = vmatprep.subr.mxu0 0.0
    %292 = vmatpush1.msra.mxu0 %v269
    %293 = vmatprep.subr.mxu0 0.0
    %294 = vmatpush1.msra.mxu0 %v270
    %295 = vmatprep.subr.mxu0 0.0
    %296 = vmatpush1.msra.mxu0 %v271
    %297 = vmatprep.subr.mxu0 0.0
    %298 = vmatpush1.msra.mxu0 %v272
    %299 = vmatprep.subr.mxu0 0.0
    %300 = vmatpush1.msra.mxu0 %v273
    %301 = vmatprep.subr.mxu0 0.0
    %302 = vmatpush1.msra.mxu0 %v274
    %303 = vmatprep.subr.mxu0 0.0
    %304 = vmatpush1.msra.mxu0 %v275
    %305 = vmatprep.subr.mxu0 0.0
    %306 = vmatpush1.msra.mxu0 %v276
    %307 = vmatprep.subr.mxu0 0.0
    %308 = vmatpush1.msra.mxu0 %v277
    %309 = vmatprep.subr.mxu0 0.0
    %310 = vmatpush1.msra.mxu0 %v278
    %311 = vmatprep.subr.mxu0 0.0
    %312 = vmatpush1.msra.mxu0 %v279
    %313 = vmatprep.subr.mxu0 0.0
    %314 = vmatpush1.msra.mxu0 %v280
    %315 = vmatprep.subr.mxu0 0.0
    %316 = vmatpush1.msra.mxu0 %v281
    %317 = vmatprep.subr.mxu0 0.0
    %318 = vmatpush1.msra.mxu0 %v282
    %319 = vmatprep.subr.mxu0 0.0
    %320 = vmatpush1.msra.mxu0 %v283
    %321 = vmatprep.subr.mxu0 0.0
    %322 = vmatpush1.msra.mxu0 %v284
    %323 = vmatprep.subr.mxu0 0.0
    %324 = vmatpush1.msra.mxu0 %v285
    %325 = vmatprep.subr.mxu0 0.0
    %326 = vmatpush1.msra.mxu0 %v286
    %327 = vmatprep.subr.mxu0 0.0
    %328 = vmatpush1.msra.mxu0 %v289
    %329 = vmatprep.subr.mxu0 0.0
    %330 = vmatpush1.msra.mxu0 0.0
    %331 = vmatprep.subr.mxu0 0.0
    %332 = vmatpush1.msra.mxu0 0.0
    %333 = vmatprep.subr.mxu0 0.0
    %334 = vmatpush1.msra.mxu0 0.0
    %335 = vmatprep.subr.mxu0 0.0
    %336 = vmatpush1.msra.mxu0 0.0
    %337 = vmatprep.subr.mxu0 0.0
    %338 = vmatpush1.msra.mxu0 0.0
    %339 = vmatprep.subr.mxu0 0.0
    %340 = vmatpush1.msra.mxu0 0.0
    %341 = vmatprep.subr.mxu0 0.0
    %342 = vmatpush1.msra.mxu0 0.0
    %343 = vmatprep.subr.mxu0 0.0
    %344 = vmatpush1.msra.mxu0 0.0
    %345 = vmatprep.subr.mxu0 0.0
    %346 = vmatpush1.msra.mxu0 0.0
    %347 = vmatprep.subr.mxu0 0.0
    %348 = vmatpush1.msra.mxu0 0.0
    %349 = vmatprep.subr.mxu0 0.0
    %350 = vmatpush1.msra.mxu0 0.0
    %351 = vmatprep.subr.mxu0 0.0
    %352 = vmatpush1.msra.mxu0 0.0
    %353 = vmatprep.subr.mxu0 0.0
    %354 = vmatpush1.msra.mxu0 0.0
    %355 = vmatprep.mubr.f32.mxu0 %v86
    %356 = vmatmul.mubr.f32.gmra.mrb[0].mxu0 %v45
    %v357 = vpop.f32.mrb[0].mxu0
    %v358 = vadd.f32 %v77, %v357
    %v359 = vpop.f32.mrb[0].mxu0
    %360 = vmatprep.mubr.f32.mxu0 %v89
    %361 = vmatmul.mubr.f32.gmra.mrb[0].mxu0 %v47
    %v362 = vpop.f32.mrb[0].mxu0
    %v363 = vadd.f32 %v82, %v362
    %v364 = vpop.f32.mrb[0].mxu0
    %365 = vdwg.mxu0
    %s366 = scalar_lea.vmem %s0, 456
    %v367 = vld [vmem:[%s366] sm:$0xff]
    %v368 = vld [vmem:[%s366 + $0x8] sm:$0xff]
    %v369 = vld [vmem:[%s366 + $0x10] sm:$0xff]
    %v370 = vld [vmem:[%s366 + $0x18] sm:$0xff]
    %v371 = vld [vmem:[%s366 + $0x20] sm:$0xff]
    %v372 = vld [vmem:[%s366 + $0x28] sm:$0xff]
    %v373 = vld [vmem:[%s366 + $0x30] sm:$0xff]
    %v374 = vld [vmem:[%s366 + $0x38] sm:$0xff]
    %v375 = vld [vmem:[%s366 + $0x40] sm:$0xff]
    %v376 = vld [vmem:[%s366 + $0x48] sm:$0xff]
    %v377 = vld [vmem:[%s366 + $0x50] sm:$0xff]
    %v378 = vld [vmem:[%s366 + $0x58] sm:$0xff]
    %v379 = vld [vmem:[%s366 + $0x60] sm:$0xff]
    %v380 = vld [vmem:[%s366 + $0x68] sm:$0xff]
    %v381 = vld [vmem:[%s366 + $0x70] sm:$0xff]
    %v382 = vld [vmem:[%s366 + $0x78] sm:$0xff]
    %v383 = vld [vmem:[%s366 + $0x80] sm:$0xff]
    %v384 = vld [vmem:[%s366 + $0x88] sm:$0xff]
    %v385 = vld [vmem:[%s366 + $0x90] sm:$0x3f]
    %v387 = vsel %vm91, %v385, 0
    %389 = vmatprep.subr.mxu0 0.0
    %390 = vmatpush1.msra.mxu0 %v367
    %391 = vmatprep.subr.mxu0 0.0
    %392 = vmatpush1.msra.mxu0 %v368
    %393 = vmatprep.subr.mxu0 0.0
    %394 = vmatpush1.msra.mxu0 %v369
    %395 = vmatprep.subr.mxu0 0.0
    %396 = vmatpush1.msra.mxu0 %v370
    %397 = vmatprep.subr.mxu0 0.0
    %398 = vmatpush1.msra.mxu0 %v371
    %399 = vmatprep.subr.mxu0 0.0
    %400 = vmatpush1.msra.mxu0 %v372
    %401 = vmatprep.subr.mxu0 0.0
    %402 = vmatpush1.msra.mxu0 %v373
    %403 = vmatprep.subr.mxu0 0.0
    %404 = vmatpush1.msra.mxu0 %v374
    %405 = vmatprep.subr.mxu0 0.0
    %406 = vmatpush1.msra.mxu0 %v375
    %407 = vmatprep.subr.mxu0 0.0
    %408 = vmatpush1.msra.mxu0 %v376
    %409 = vmatprep.subr.mxu0 0.0
    %410 = vmatpush1.msra.mxu0 %v377
    %411 = vmatprep.subr.mxu0 0.0
    %412 = vmatpush1.msra.mxu0 %v378
    %413 = vmatprep.subr.mxu0 0.0
    %414 = vmatpush1.msra.mxu0 %v379
    %415 = vmatprep.subr.mxu0 0.0
    %416 = vmatpush1.msra.mxu0 %v380
    %417 = vmatprep.subr.mxu0 0.0
    %418 = vmatpush1.msra.mxu0 %v381
    %419 = vmatprep.subr.mxu0 0.0
    %420 = vmatpush1.msra.mxu0 %v382
    %421 = vmatprep.subr.mxu0 0.0
    %422 = vmatpush1.msra.mxu0 %v383
    %423 = vmatprep.subr.mxu0 0.0
    %424 = vmatpush1.msra.mxu0 %v384
    %425 = vmatprep.subr.mxu0 0.0
    %426 = vmatpush1.msra.mxu0 %v387
    %427 = vmatprep.subr.mxu0 0.0
    %428 = vmatpush1.msra.mxu0 0.0
    %429 = vmatprep.subr.mxu0 0.0
    %430 = vmatpush1.msra.mxu0 0.0
    %431 = vmatprep.subr.mxu0 0.0
    %432 = vmatpush1.msra.mxu0 0.0
    %433 = vmatprep.subr.mxu0 0.0
    %434 = vmatpush1.msra.mxu0 0.0
    %435 = vmatprep.subr.mxu0 0.0
    %436 = vmatpush1.msra.mxu0 0.0
    %437 = vmatprep.subr.mxu0 0.0
    %438 = vmatpush1.msra.mxu0 0.0
    %439 = vmatprep.subr.mxu0 0.0
    %440 = vmatpush1.msra.mxu0 0.0
    %441 = vmatprep.subr.mxu0 0.0
    %442 = vmatpush1.msra.mxu0 0.0
    %443 = vmatprep.subr.mxu0 0.0
    %444 = vmatpush1.msra.mxu0 0.0
    %445 = vmatprep.subr.mxu0 0.0
    %446 = vmatpush1.msra.mxu0 0.0
    %447 = vmatprep.subr.mxu0 0.0
    %448 = vmatpush1.msra.mxu0 0.0
    %449 = vmatprep.subr.mxu0 0.0
    %450 = vmatpush1.msra.mxu0 0.0
    %451 = vmatprep.subr.mxu0 0.0
    %452 = vmatpush1.msra.mxu0 0.0
    %453 = vmatprep.mubr.f32.mxu0 %v86
    %454 = vmatmul.mubr.f32.gmra.mrb[0].mxu0 %v45
    %v455 = vpop.f32.mrb[0].mxu0
    %v456 = vadd.f32 %v77, %v455
    %v457 = vpop.f32.mrb[0].mxu0
    %458 = vmatprep.mubr.f32.mxu0 %v89
    %459 = vmatmul.mubr.f32.gmra.mrb[0].mxu0 %v47
    %v460 = vpop.f32.mrb[0].mxu0
    %v461 = vadd.f32 %v82, %v460
    %v462 = vpop.f32.mrb[0].mxu0
    %463 = vdwg.mxu0
    %v464 = vadd.f32 %v162, %v260
    %v465 = vadd.f32 %v167, %v265
    %v466 = vadd.f32 %v464, %v358
    %v467 = vadd.f32 %v465, %v363
    %v468 = vadd.f32 %v466, %v456
    %v469 = vadd.f32 %v467, %v461
    %vm470 = vcmask 408576
    %v471 = vsel %vm470, %v468, 0.0
    %472 = vadd.xlane.f32.xlu0 %v471
    %v473 = vpop.xlane.xlu0 %472
    %v474 = vsel %vm470, %v469, 0.0
    %475 = vadd.xlane.f32.xlu0 %v474
    %v476 = vpop.xlane.xlu0 %475
    %v477 = vrcp.pop 200.0
    %v478 = vmul.f32 %v473, %v477
    %v479 = vmul.f32 %v476, %v477
    %v480 = vmul.f32 %v162, %v162
    %v481 = vmul.f32 %v167, %v167
    %v482 = vmul.f32 %v260, %v260
    %v483 = vmul.f32 %v265, %v265
    %v484 = vadd.f32 %v480, %v482
    %v485 = vadd.f32 %v481, %v483
    %v486 = vmul.f32 %v358, %v358
    %v487 = vmul.f32 %v363, %v363
    %v488 = vadd.f32 %v484, %v486
    %v489 = vadd.f32 %v485, %v487
    %v490 = vmul.f32 %v456, %v456
    %v491 = vmul.f32 %v461, %v461
    %v492 = vadd.f32 %v488, %v490
    %v493 = vadd.f32 %v489, %v491
    %v494 = vsel %vm470, %v492, 0.0
    %495 = vadd.xlane.f32.xlu0 %v494
    %v496 = vpop.xlane.xlu0 %495
    %v497 = vsel %vm470, %v493, 0.0
    %498 = vadd.xlane.f32.xlu0 %v497
    %v499 = vpop.xlane.xlu0 %498
    %v500 = vmul.f32 %v496, %v477
    %v501 = vmul.f32 %v499, %v477
    %v502 = vmul.f32 %v478, %v478
    %v503 = vmul.f32 %v479, %v479
    %v504 = vsub.f32 %v500, %v502
    %v505 = vsub.f32 %v501, %v503
    %v506 = vadd.f32 %v504, 1e-05
    %v507 = vadd.f32 %v505, 1e-05
    %v508 = vrsqrt.pop %v506
    %v509 = vrsqrt.pop %v507
    %v510 = vmul.f32 %v51, %v508
    %v511 = vmul.f32 %v52, %v509
    %v512 = vmul.f32 %v478, %v510
    %v513 = vmul.f32 %v479, %v511
    %v514 = vsub.f32 %v53, %v512
    %v515 = vsub.f32 %v54, %v513
    %517 = vset.pattern.permute.xlu0 0
    %518 = vperm.xlu0 %517, %v510
    %v519 = vpop.permute.xlu0 %518
    %522 = vset.pattern.permute.xlu0 0
    %523 = vperm.xlu0 %522, %v511
    %v524 = vpop.permute.xlu0 %523
    %v526 = vmul.f32 %v162, %v519
    %v527 = vmul.f32 %v167, %v524
    %529 = vset.pattern.permute.xlu0 0
    %530 = vperm.xlu0 %529, %v514
    %v531 = vpop.permute.xlu0 %530
    %534 = vset.pattern.permute.xlu0 0
    %535 = vperm.xlu0 %534, %v515
    %v536 = vpop.permute.xlu0 %535
    %v538 = vadd.f32 %v526, %v531
    %v539 = vadd.f32 %v527, %v536
    %v540 = vmax.f32 %v538, 0.0
    %v541 = vmax.f32 %v539, 0.0
    %v542 = vmul.f32 %v260, %v519
    %v543 = vmul.f32 %v265, %v524
    %v544 = vadd.f32 %v542, %v531
    %v545 = vadd.f32 %v543, %v536
    %v546 = vmax.f32 %v544, 0.0
    %v547 = vmax.f32 %v545, 0.0
    %v548 = vmul.f32 %v358, %v519
    %v549 = vmul.f32 %v363, %v524
    %v550 = vadd.f32 %v548, %v531
    %v551 = vadd.f32 %v549, %v536
    %v552 = vmax.f32 %v550, 0.0
    %v553 = vmax.f32 %v551, 0.0
    %v554 = vmul.f32 %v456, %v519
    %v555 = vmul.f32 %v461, %v524
    %v556 = vadd.f32 %v554, %v531
    %v557 = vadd.f32 %v555, %v536
    %v558 = vmax.f32 %v556, 0.0
    %v559 = vmax.f32 %v557, 0.0
    %v560 = vmax.f32 %v540, %v546
    %v561 = vmax.f32 %v541, %v547
    %v562 = vmax.f32 %v552, %v558
    %v563 = vmax.f32 %v553, %v559
    %v564 = vmax.f32 %v560, %v562
    %v565 = vmax.f32 %v561, %v563
    %vm566 = vcmask 196608
    %567 = vst.msk [vmem:[#allocation2] sm:$0x1] %vm566, %v564
    %v570 = vunpack.c.l.s4 1983009808
    %v571 = vunpack.c.0.s8 %v570
    %v572 = vlaneseq
    %v573 = vshrl.u32 %v572, 7
    %v574 = vsub.s32 %v571, %v573
    %v575 = vrot.slane %v564, %v574
    %v576 = vrot.slane %v575, 7
    %v577 = vrot.slane %v576, 2
    %578 = vrot.lane.b32.xlu0 %v577, 25
    %v579 = vpop.permute.xlu0 %578
    %vm581 = vcmask 401608
    %582 = vst.msk [vmem:[#allocation2] sm:$0x1] %vm581, %v579
    %v583 = vcombine.high %v575, %v575
    %584 = vrot.lane.b32.xlu0 %v583, 50
    %v585 = vpop.permute.xlu0 %584
    %vm587 = vcmask 606608
    %588 = vst.msk [vmem:[#allocation2] sm:$0x1] %vm587, %v585
    %v589 = vrot.slane %v583, 7
    %v590 = vrot.slane %v589, 2
    %591 = vrot.lane.b32.xlu0 %v590, 75
    %v592 = vpop.permute.xlu0 %591
    %vm594 = vcmask 811608
    %595 = vst.msk [vmem:[#allocation2] sm:$0x1] %vm594, %v592
    %v596 = vcombine.high %v564, %v564
    %v598 = vunpack.c.l.s4 1983009808
    %v599 = vunpack.c.0.s8 %v598
    %v600 = vlaneseq
    %v601 = vshrl.u32 %v600, 7
    %v602 = vsub.s32 %v599, %v601
    %v603 = vrot.slane %v596, %v602
    %604 = vrot.lane.b32.xlu0 %v603, 100
    %v605 = vpop.permute.xlu0 %604
    %vm607 = vcmask 1016608
    %608 = vst.msk [vmem:[#allocation2] sm:$0x1] %vm607, %v605
    %v609 = vrot.slane %v603, 7
    %v610 = vrot.slane %v609, 2
    %611 = vrot.lane.b32.xlu0 %v610, 125
    %v612 = vpop.permute.xlu0 %611
    %v613 = vrot.slane %v612, 6
    %vm614 = vcmask 1022976
    %v615 = vsel %vm614, %v613, %v612
    %vm617 = vcmask 1041384
    %vm618 = vcmask 174082
    %vm619 = vmor %vm618, %vm617
    %620 = vst.msk [vmem:[#allocation2] sm:$0x5] %vm619, %v615
    %v621 = vcombine.high %v603, %v603
    %622 = vrot.lane.b32.xlu0 %v621, 22
    %v623 = vpop.permute.xlu0 %622
    %vm625 = vcmask 377008
    %626 = vst.msk [vmem:[#allocation2 + $0x2] sm:$0x1] %vm625, %v623
    %v627 = vrot.slane %v621, 7
    %v628 = vrot.slane %v627, 2
    %629 = vrot.lane.b32.xlu0 %v628, 47
    %v630 = vpop.permute.xlu0 %629
    %vm632 = vcmask 582008
    %633 = vst.msk [vmem:[#allocation2 + $0x2] sm:$0x1] %vm632, %v630
    %v636 = vunpack.c.l.s4 1983009808
    %v637 = vunpack.c.0.s8 %v636
    %v638 = vlaneseq
    %v639 = vshrl.u32 %v638, 7
    %v640 = vsub.s32 %v637, %v639
    %v641 = vrot.slane %v565, %v640
    %642 = vrot.lane.b32.xlu0 %v641, 72
    %v643 = vpop.permute.xlu0 %642
    %vm645 = vcmask 787008
    %646 = vst.msk [vmem:[#allocation2 + $0x2] sm:$0x1] %vm645, %v643
    %v647 = vrot.slane %v641, 7
    %v648 = vrot.slane %v647, 2
    %649 = vrot.lane.b32.xlu0 %v648, 97
    %v650 = vpop.permute.xlu0 %649
    %vm652 = vcmask 992008
    %653 = vst.msk [vmem:[#allocation2 + $0x2] sm:$0x1] %vm652, %v650
    %v654 = vcombine.high %v641, %v641
    %655 = vrot.lane.b32.xlu0 %v654, 122
    %v656 = vpop.permute.xlu0 %655
    %v657 = vrot.slane %v656, 6
    %vm658 = vcmask 998400
    %v659 = vsel %vm658, %v657, %v656
    %vm661 = vcmask 1041360
    %vm662 = vcmask 149506
    %vm663 = vmor %vm662, %vm661
    %664 = vst.msk [vmem:[#allocation2 + $0x2] sm:$0x5] %vm663, %v659
    %v665 = vrot.slane %v654, 7
    %v666 = vrot.slane %v665, 2
    %667 = vrot.lane.b32.xlu0 %v666, 19
    %v668 = vpop.permute.xlu0 %667
    %vm670 = vcmask 352408
    %671 = vst.msk [vmem:[#allocation2 + $0x4] sm:$0x1] %vm670, %v668
    %v672 = vcombine.high %v565, %v565
    %v674 = vunpack.c.l.s4 1983009808
    %v675 = vunpack.c.0.s8 %v674
    %v676 = vlaneseq
    %v677 = vshrl.u32 %v676, 7
    %v678 = vsub.s32 %v675, %v677
    %v679 = vrot.slane %v672, %v678
    %680 = vrot.lane.b32.xlu0 %v679, 44
    %v681 = vpop.permute.xlu0 %680
    %vm683 = vcmask 557408
    %684 = vst.msk [vmem:[#allocation2 + $0x4] sm:$0x1] %vm683, %v681
    %v685 = vrot.slane %v679, 7
    %v686 = vrot.slane %v685, 2
    %687 = vrot.lane.b32.xlu0 %v686, 69
    %v688 = vpop.permute.xlu0 %687
    %vm690 = vcmask 762408
    %691 = vst.msk [vmem:[#allocation2 + $0x4] sm:$0x1] %vm690, %v688
    %v692 = vcombine.high %v679, %v679
    %693 = vrot.lane.b32.xlu0 %v692, 94
    %v694 = vpop.permute.xlu0 %693
    %vm696 = vcmask 967408
    %697 = vst.msk [vmem:[#allocation2 + $0x4] sm:$0x1] %vm696, %v694
    %v698 = vrot.slane %v692, 7
    %v699 = vrot.slane %v698, 2
    %700 = vrot.lane.b32.xlu0 %v699, 119
    %v701 = vpop.permute.xlu0 %700
    %v702 = vrot.slane %v701, 6
    %vm703 = vcmask 973824
    %v704 = vsel %vm703, %v702, %v701
    %vm706 = vcmask 1041336
    %vm707 = vcmask 124930
    %vm708 = vmor %vm707, %vm706
    %709 = vst.msk [vmem:[#allocation2 + $0x4] sm:$0x5] %vm708, %v704
    %710 = vrot.lane.b32.xlu0 %v575, 103
    %v711 = vpop.permute.xlu0 %710
    %713 = vst.msk [vmem:[#allocation2 + $0x1] sm:$0x1] %vm566, %v711
    %715 = vst.msk [vmem:[#allocation2 + $0x1] sm:$0x1] %vm581, %v577
    %716 = vrot.lane.b32.xlu0 %v583, 25
    %v717 = vpop.permute.xlu0 %716
    %719 = vst.msk [vmem:[#allocation2 + $0x1] sm:$0x1] %vm587, %v717
    %720 = vrot.lane.b32.xlu0 %v590, 50
    %v721 = vpop.permute.xlu0 %720
    %723 = vst.msk [vmem:[#allocation2 + $0x1] sm:$0x1] %vm594, %v721
    %724 = vrot.lane.b32.xlu0 %v603, 75
    %v725 = vpop.permute.xlu0 %724
    %727 = vst.msk [vmem:[#allocation2 + $0x1] sm:$0x1] %vm607, %v725
    %728 = vrot.lane.b32.xlu0 %v610, 100
    %v729 = vpop.permute.xlu0 %728
    %v730 = vrot.slane %v729, 6
    %vm731 = vcmask 818176
    %v732 = vsel %vm731, %v730, %v729
    %734 = vst.msk [vmem:[#allocation2 + $0x1] sm:$0x5] %vm619, %v732
    %735 = vrot.lane.b32.xlu0 %v621, 125
    %v736 = vpop.permute.xlu0 %735
    %738 = vst.msk [vmem:[#allocation2 + $0x3] sm:$0x1] %vm625, %v736
    %739 = vrot.lane.b32.xlu0 %v628, 22
    %v740 = vpop.permute.xlu0 %739
    %742 = vst.msk [vmem:[#allocation2 + $0x3] sm:$0x1] %vm632, %v740
    %743 = vrot.lane.b32.xlu0 %v641, 47
    %v744 = vpop.permute.xlu0 %743
    %746 = vst.msk [vmem:[#allocation2 + $0x3] sm:$0x1] %vm645, %v744
    %747 = vrot.lane.b32.xlu0 %v648, 72
    %v748 = vpop.permute.xlu0 %747
    %750 = vst.msk [vmem:[#allocation2 + $0x3] sm:$0x1] %vm652, %v748
    %751 = vrot.lane.b32.xlu0 %v654, 97
    %v752 = vpop.permute.xlu0 %751
    %v753 = vrot.slane %v752, 6
    %vm754 = vcmask 793600
    %v755 = vsel %vm754, %v753, %v752
    %757 = vst.msk [vmem:[#allocation2 + $0x3] sm:$0x5] %vm663, %v755
    %758 = vrot.lane.b32.xlu0 %v666, 122
    %v759 = vpop.permute.xlu0 %758
    %761 = vst.msk [vmem:[#allocation2 + $0x5] sm:$0x1] %vm670, %v759
    %762 = vrot.lane.b32.xlu0 %v679, 19
    %v763 = vpop.permute.xlu0 %762
    %765 = vst.msk [vmem:[#allocation2 + $0x5] sm:$0x1] %vm683, %v763
    %766 = vrot.lane.b32.xlu0 %v686, 44
    %v767 = vpop.permute.xlu0 %766
    %769 = vst.msk [vmem:[#allocation2 + $0x5] sm:$0x1] %vm690, %v767
    %770 = vrot.lane.b32.xlu0 %v692, 69
    %v771 = vpop.permute.xlu0 %770
    %773 = vst.msk [vmem:[#allocation2 + $0x5] sm:$0x1] %vm696, %v771
    %774 = vrot.lane.b32.xlu0 %v699, 94
    %v775 = vpop.permute.xlu0 %774
    %v776 = vrot.slane %v775, 6
    %vm777 = vcmask 769024
    %v778 = vsel %vm777, %v776, %v775
    %780 = vst.msk [vmem:[#allocation2 + $0x5] sm:$0x5] %vm708, %v778
    %v781 = vld [vmem:[#allocation2] sm:$0xff]
    %v782 = vld [vmem:[%s5] sm:$0xff]
    %v783 = vld [vmem:[%s5 + $0x8] sm:$0xff]
    %v784 = vld [vmem:[%s5 + $0x10] sm:$0xff]
    %v785 = vld [vmem:[%s5 + $0x18] sm:$0xff]
    %v786 = vld [vmem:[%s5 + $0x20] sm:$0xff]
    %v787 = vld [vmem:[%s5 + $0x28] sm:$0xff]
    %v788 = vld [vmem:[%s5 + $0x30] sm:$0xff]
    %v789 = vld [vmem:[%s5 + $0x38] sm:$0xff]
    %v790 = vld [vmem:[%s5 + $0x40] sm:$0xff]
    %v791 = vld [vmem:[%s5 + $0x48] sm:$0xff]
    %v792 = vld [vmem:[%s5 + $0x50] sm:$0xff]
    %v793 = vld [vmem:[%s5 + $0x58] sm:$0xff]
    %v794 = vld [vmem:[%s5 + $0x60] sm:$0xff]
    %v795 = vld [vmem:[%s5 + $0x68] sm:$0xff]
    %v796 = vld [vmem:[%s5 + $0x70] sm:$0xff]
    %v797 = vld [vmem:[%s5 + $0x78] sm:$0xff]
    %v798 = vld [vmem:[%s5 + $0x80] sm:$0xff]
    %v799 = vld [vmem:[%s5 + $0x88] sm:$0xff]
    %v800 = vld [vmem:[%s5 + $0x90] sm:$0xff]
    %v801 = vld [vmem:[%s5 + $0x98] sm:$0xff]
    %v802 = vld [vmem:[%s5 + $0xa0] sm:$0xff]
    %v803 = vld [vmem:[%s5 + $0xa8] sm:$0xff]
    %v804 = vld [vmem:[%s5 + $0xb0] sm:$0xff]
    %v805 = vld [vmem:[%s5 + $0xb8] sm:$0xff]
    %v806 = vld [vmem:[%s5 + $0xc0] sm:$0xff]
    %v807 = vld [vmem:[%s5 + $0xc8] sm:$0xff]
    %v808 = vld [vmem:[%s5 + $0xd0] sm:$0xff]
    %v809 = vld [vmem:[%s5 + $0xd8] sm:$0xff]
    %v810 = vld [vmem:[%s5 + $0xe0] sm:$0xff]
    %v811 = vld [vmem:[%s5 + $0xe8] sm:$0xff]
    %v812 = vld [vmem:[%s5 + $0xf0] sm:$0xff]
    %v813 = vld [vmem:[%s5 + $0xf8] sm:$0xff]
    %v814 = vld [vmem:[%s5 + $0x100] sm:$0xff]
    %v815 = vld [vmem:[%s5 + $0x108] sm:$0xff]
    %v816 = vld [vmem:[%s5 + $0x110] sm:$0xff]
    %v817 = vld [vmem:[%s5 + $0x118] sm:$0xff]
    %v818 = vld [vmem:[%s5 + $0x120] sm:$0xff]
    %v819 = vld [vmem:[%s5 + $0x128] sm:$0xff]
    %v820 = vld [vmem:[%s5 + $0x130] sm:$0xff]
    %v821 = vld [vmem:[%s5 + $0x138] sm:$0xff]
    %v822 = vld [vmem:[%s5 + $0x140] sm:$0xff]
    %v823 = vld [vmem:[%s5 + $0x148] sm:$0xff]
    %v824 = vld [vmem:[%s5 + $0x150] sm:$0xff]
    %v825 = vld [vmem:[%s5 + $0x158] sm:$0xff]
    %v826 = vld [vmem:[%s5 + $0x160] sm:$0xff]
    %v827 = vld [vmem:[%s5 + $0x168] sm:$0xff]
    %v828 = vld [vmem:[%s5 + $0x170] sm:$0xff]
    %v829 = vld [vmem:[%s5 + $0x178] sm:$0xff]
    %v830 = vld [vmem:[%s5 + $0x180] sm:$0xff]
    %v831 = vld [vmem:[%s5 + $0x188] sm:$0xff]
    %v832 = vld [vmem:[%s6] sm:$0x1]
    %v834 = vlaneseq
    %v835 = vshrl.u32 %v834, 7
    %v836 = vsub.s32 0, %v835
    %v837 = vrot.slane %v832, %v836
    %v840 = vcombine.high %v781, %v781
    %v842 = vunpack.c.l.s4 1983009808
    %v843 = vunpack.c.0.s8 %v842
    %v844 = vlaneseq
    %v845 = vshrl.u32 %v844, 7
    %v846 = vsub.s32 %v843, %v845
    %v847 = vrot.slane %v781, %v846
    %v849 = vunpack.c.l.s4 1983009808
    %v850 = vunpack.c.0.s8 %v849
    %v851 = vlaneseq
    %v852 = vshrl.u32 %v851, 7
    %v853 = vsub.s32 %v850, %v852
    %v854 = vrot.slane %v840, %v853
    %v855 = vcombine.high %v847, %v847
    %v856 = vcombine.high %v854, %v854
    %vm860 = vcmask 130048
    %v861 = vsel %vm860, %v856, 0
    %863 = vmatprep.subr.mxu0 0.0
    %864 = vmatpush1.msra.mxu0 %v782
    %865 = vmatprep.subr.mxu0 0.0
    %866 = vmatpush1.msra.mxu0 %v783
    %867 = vmatprep.subr.mxu0 0.0
    %868 = vmatpush1.msra.mxu0 %v784
    %869 = vmatprep.subr.mxu0 0.0
    %870 = vmatpush1.msra.mxu0 %v785
    %871 = vmatprep.subr.mxu0 0.0
    %872 = vmatpush1.msra.mxu0 %v786
    %873 = vmatprep.subr.mxu0 0.0
    %874 = vmatpush1.msra.mxu0 %v787
    %875 = vmatprep.subr.mxu0 0.0
    %876 = vmatpush1.msra.mxu0 %v788
    %877 = vmatprep.subr.mxu0 0.0
    %878 = vmatpush1.msra.mxu0 %v789
    %879 = vmatprep.subr.mxu0 0.0
    %880 = vmatpush1.msra.mxu0 %v790
    %881 = vmatprep.subr.mxu0 0.0
    %882 = vmatpush1.msra.mxu0 %v791
    %883 = vmatprep.subr.mxu0 0.0
    %884 = vmatpush1.msra.mxu0 %v792
    %885 = vmatprep.subr.mxu0 0.0
    %886 = vmatpush1.msra.mxu0 %v793
    %887 = vmatprep.subr.mxu0 0.0
    %888 = vmatpush1.msra.mxu0 %v794
    %889 = vmatprep.subr.mxu0 0.0
    %890 = vmatpush1.msra.mxu0 %v795
    %891 = vmatprep.subr.mxu0 0.0
    %892 = vmatpush1.msra.mxu0 %v796
    %893 = vmatprep.subr.mxu0 0.0
    %894 = vmatpush1.msra.mxu0 %v797
    %895 = vmatprep.subr.mxu0 0.0
    %896 = vmatpush1.msra.mxu0 %v798
    %897 = vmatprep.subr.mxu0 0.0
    %898 = vmatpush1.msra.mxu0 %v799
    %899 = vmatprep.subr.mxu0 0.0
    %900 = vmatpush1.msra.mxu0 %v800
    %901 = vmatprep.subr.mxu0 0.0
    %902 = vmatpush1.msra.mxu0 %v801
    %903 = vmatprep.subr.mxu0 0.0
    %904 = vmatpush1.msra.mxu0 %v802
    %905 = vmatprep.subr.mxu0 0.0
    %906 = vmatpush1.msra.mxu0 %v803
    %907 = vmatprep.subr.mxu0 0.0
    %908 = vmatpush1.msra.mxu0 %v804
    %909 = vmatprep.subr.mxu0 0.0
    %910 = vmatpush1.msra.mxu0 %v805
    %911 = vmatprep.subr.mxu0 0.0
    %912 = vmatpush1.msra.mxu0 %v806
    %913 = vmatprep.subr.mxu0 0.0
    %914 = vmatpush1.msra.mxu0 %v807
    %915 = vmatprep.subr.mxu0 0.0
    %916 = vmatpush1.msra.mxu0 %v808
    %917 = vmatprep.subr.mxu0 0.0
    %918 = vmatpush1.msra.mxu0 %v809
    %919 = vmatprep.subr.mxu0 0.0
    %920 = vmatpush1.msra.mxu0 %v810
    %921 = vmatprep.subr.mxu0 0.0
    %922 = vmatpush1.msra.mxu0 %v811
    %923 = vmatprep.subr.mxu0 0.0
    %924 = vmatpush1.msra.mxu0 %v812
    %925 = vmatprep.subr.mxu0 0.0
    %926 = vmatpush1.msra.mxu0 %v813
    %927 = vmatprep.mubr.f32.mxu0 %v855
    %928 = vmatmul.mubr.f32.gmra.mrb[0].mxu0 %v847
    %v929 = vpop.f32.mrb[0].mxu0
    %v930 = vadd.f32 %v837, %v929
    %v931 = vpop.f32.mrb[0].mxu0
    %932 = vdwg.mxu0
    %933 = vmatprep.subr.mxu0 0.0
    %934 = vmatpush1.msra.mxu0 %v814
    %935 = vmatprep.subr.mxu0 0.0
    %936 = vmatpush1.msra.mxu0 %v815
    %937 = vmatprep.subr.mxu0 0.0
    %938 = vmatpush1.msra.mxu0 %v816
    %939 = vmatprep.subr.mxu0 0.0
    %940 = vmatpush1.msra.mxu0 %v817
    %941 = vmatprep.subr.mxu0 0.0
    %942 = vmatpush1.msra.mxu0 %v818
    %943 = vmatprep.subr.mxu0 0.0
    %944 = vmatpush1.msra.mxu0 %v819
    %945 = vmatprep.subr.mxu0 0.0
    %946 = vmatpush1.msra.mxu0 %v820
    %947 = vmatprep.subr.mxu0 0.0
    %948 = vmatpush1.msra.mxu0 %v821
    %949 = vmatprep.subr.mxu0 0.0
    %950 = vmatpush1.msra.mxu0 %v822
    %951 = vmatprep.subr.mxu0 0.0
    %952 = vmatpush1.msra.mxu0 %v823
    %953 = vmatprep.subr.mxu0 0.0
    %954 = vmatpush1.msra.mxu0 %v824
    %955 = vmatprep.subr.mxu0 0.0
    %956 = vmatpush1.msra.mxu0 %v825
    %957 = vmatprep.subr.mxu0 0.0
    %958 = vmatpush1.msra.mxu0 %v826
    %959 = vmatprep.subr.mxu0 0.0
    %960 = vmatpush1.msra.mxu0 %v827
    %961 = vmatprep.subr.mxu0 0.0
    %962 = vmatpush1.msra.mxu0 %v828
    %963 = vmatprep.subr.mxu0 0.0
    %964 = vmatpush1.msra.mxu0 %v829
    %965 = vmatprep.subr.mxu0 0.0
    %966 = vmatpush1.msra.mxu0 %v830
    %967 = vmatprep.subr.mxu0 0.0
    %968 = vmatpush1.msra.mxu0 %v831
    %969 = vmatprep.subr.mxu0 0.0
    %970 = vmatpush1.msra.mxu0 0.0
    %971 = vmatprep.subr.mxu0 0.0
    %972 = vmatpush1.msra.mxu0 0.0
    %973 = vmatprep.subr.mxu0 0.0
    %974 = vmatpush1.msra.mxu0 0.0
    %975 = vmatprep.subr.mxu0 0.0
    %976 = vmatpush1.msra.mxu0 0.0
    %977 = vmatprep.subr.mxu0 0.0
    %978 = vmatpush1.msra.mxu0 0.0
    %979 = vmatprep.subr.mxu0 0.0
    %980 = vmatpush1.msra.mxu0 0.0
    %981 = vmatprep.subr.mxu0 0.0
    %982 = vmatpush1.msra.mxu0 0.0
    %983 = vmatprep.subr.mxu0 0.0
    %984 = vmatpush1.msra.mxu0 0.0
    %985 = vmatprep.subr.mxu0 0.0
    %986 = vmatpush1.msra.mxu0 0.0
    %987 = vmatprep.subr.mxu0 0.0
    %988 = vmatpush1.msra.mxu0 0.0
    %989 = vmatprep.subr.mxu0 0.0
    %990 = vmatpush1.msra.mxu0 0.0
    %991 = vmatprep.subr.mxu0 0.0
    %992 = vmatpush1.msra.mxu0 0.0
    %993 = vmatprep.subr.mxu0 0.0
    %994 = vmatpush1.msra.mxu0 0.0
    %995 = vmatprep.subr.mxu0 0.0
    %996 = vmatpush1.msra.mxu0 0.0
    %997 = vmatprep.mubr.f32.mxu0 %v861
    %998 = vmatmul.mubr.f32.gmra.mrb[0].mxu0 %v854
    %v999 = vpop.f32.mrb[0].mxu0
    %v1000 = vadd.f32 %v930, %v999
    %v1001 = vpop.f32.mrb[0].mxu0
    %1002 = vdwg.mxu0
    %vm1003 = vcmask 975872
    %v1004 = vsel %vm1003, %v1000, 0.0
    %v1005 = vrot.slane %v1004, 4
    %v1006 = vadd.f32 %v1004, %v1005
    %v1007 = vrot.slane %v1006, 2
    %v1008 = vadd.f32 %v1006, %v1007
    %v1009 = vrot.slane %v1008, 1
    %v1010 = vadd.f32 %v1008, %v1009
    %v1011 = vrcp.pop 2.0
    %v1012 = vmul.f32 %v1010, %v1011
    %v1013 = vmul.f32 %v1000, %v1000
    %v1014 = vsel %vm1003, %v1013, 0.0
    %v1015 = vrot.slane %v1014, 4
    %v1016 = vadd.f32 %v1014, %v1015
    %v1017 = vrot.slane %v1016, 2
    %v1018 = vadd.f32 %v1016, %v1017
    %v1019 = vrot.slane %v1018, 1
    %v1020 = vadd.f32 %v1018, %v1019
    %v1021 = vmul.f32 %v1020, %v1011
    %v1022 = vmul.f32 %v1012, %v1012
    %v1023 = vsub.f32 %v1021, %v1022
    %v1024 = vld [vmem:[%s7] sm:$0x1]
    %v1025 = vsub.f32 %v1000, %v1012
    %v1027 = vlaneseq
    %v1028 = vshrl.u32 %v1027, 7
    %v1029 = vsub.s32 0, %v1028
    %v1030 = vrot.slane %v1024, %v1029
    %v1032 = vmul.f32 %v1030, %v1025
    %v1033 = vadd.f32 %v1023, 1e-05
    %v1034 = vrsqrt.pop %v1033
    %v1035 = vmul.f32 %v1032, %v1034
    %v1036 = vld [vmem:[%s8] sm:$0x1]
    %v1038 = vlaneseq
    %v1039 = vshrl.u32 %v1038, 7
    %v1040 = vsub.s32 0, %v1039
    %v1041 = vrot.slane %v1036, %v1040
    %v1043 = vadd.f32 %v1035, %v1041
    %v1044 = vmax.f32 %v1043, 0.0
    %v1045 = vld [vmem:[%s9] sm:$0xff]
    %v1046 = vld [vmem:[%s9 + $0x8] sm:$0xff]
    %v1047 = vld [vmem:[%s9 + $0x10] sm:$0xff]
    %v1048 = vld [vmem:[%s9 + $0x18] sm:$0xff]
    %v1049 = vld [vmem:[%s9 + $0x20] sm:$0xff]
    %v1050 = vld [vmem:[%s9 + $0x28] sm:$0xff]
    %v1051 = vld [vmem:[%s9 + $0x30] sm:$0xff]
    %v1052 = vld [vmem:[%s9 + $0x38] sm:$0xff]
    %v1053 = vld [vmem:[%s9 + $0x40] sm:$0xff]
    %v1054 = vld [vmem:[%s9 + $0x48] sm:$0xff]
    %v1055 = vld [vmem:[%s9 + $0x50] sm:$0xff]
    %v1056 = vld [vmem:[%s9 + $0x58] sm:$0xff]
    %v1057 = vld [vmem:[%s9 + $0x60] sm:$0xff]
    %v1058 = vld [vmem:[%s9 + $0x68] sm:$0xff]
    %v1059 = vld [vmem:[%s9 + $0x70] sm:$0xff]
    %v1060 = vld [vmem:[%s10] sm:$0x1]
    %v1062 = vlaneseq
    %v1063 = vshrl.u32 %v1062, 7
    %v1064 = vsub.s32 0, %v1063
    %v1065 = vrot.slane %v1060, %v1064
    %vm1067 = vcmask 982016
    %v1069 = vsel %vm1067, %v1044, 0
    %1071 = vmatprep.subr.mxu0 0.0
    %1072 = vmatpush1.msra.mxu0 %v1045
    %1073 = vmatprep.subr.mxu0 0.0
    %1074 = vmatpush1.msra.mxu0 %v1046
    %1075 = vmatprep.subr.mxu0 0.0
    %1076 = vmatpush1.msra.mxu0 %v1047
    %1077 = vmatprep.subr.mxu0 0.0
    %1078 = vmatpush1.msra.mxu0 %v1048
    %1079 = vmatprep.subr.mxu0 0.0
    %1080 = vmatpush1.msra.mxu0 %v1049
    %1081 = vmatprep.subr.mxu0 0.0
    %1082 = vmatpush1.msra.mxu0 %v1050
    %1083 = vmatprep.subr.mxu0 0.0
    %1084 = vmatpush1.msra.mxu0 %v1051
    %1085 = vmatprep.subr.mxu0 0.0
    %1086 = vmatpush1.msra.mxu0 %v1052
    %1087 = vmatprep.subr.mxu0 0.0
    %1088 = vmatpush1.msra.mxu0 %v1053
    %1089 = vmatprep.subr.mxu0 0.0
    %1090 = vmatpush1.msra.mxu0 %v1054
    %1091 = vmatprep.subr.mxu0 0.0
    %1092 = vmatpush1.msra.mxu0 %v1055
    %1093 = vmatprep.subr.mxu0 0.0
    %1094 = vmatpush1.msra.mxu0 %v1056
    %1095 = vmatprep.subr.mxu0 0.0
    %1096 = vmatpush1.msra.mxu0 %v1057
    %1097 = vmatprep.subr.mxu0 0.0
    %1098 = vmatpush1.msra.mxu0 %v1058
    %1099 = vmatprep.subr.mxu0 0.0
    %1100 = vmatpush1.msra.mxu0 %v1059
    %1101 = vmatprep.subr.mxu0 0.0
    %1102 = vmatpush1.msra.mxu0 0.0
    %1103 = vmatprep.subr.mxu0 0.0
    %1104 = vmatpush1.msra.mxu0 0.0
    %1105 = vmatprep.subr.mxu0 0.0
    %1106 = vmatpush1.msra.mxu0 0.0
    %1107 = vmatprep.subr.mxu0 0.0
    %1108 = vmatpush1.msra.mxu0 0.0
    %1109 = vmatprep.subr.mxu0 0.0
    %1110 = vmatpush1.msra.mxu0 0.0
    %1111 = vmatprep.subr.mxu0 0.0
    %1112 = vmatpush1.msra.mxu0 0.0
    %1113 = vmatprep.subr.mxu0 0.0
    %1114 = vmatpush1.msra.mxu0 0.0
    %1115 = vmatprep.subr.mxu0 0.0
    %1116 = vmatpush1.msra.mxu0 0.0
    %1117 = vmatprep.subr.mxu0 0.0
    %1118 = vmatpush1.msra.mxu0 0.0
    %1119 = vmatprep.subr.mxu0 0.0
    %1120 = vmatpush1.msra.mxu0 0.0
    %1121 = vmatprep.subr.mxu0 0.0
    %1122 = vmatpush1.msra.mxu0 0.0
    %1123 = vmatprep.subr.mxu0 0.0
    %1124 = vmatpush1.msra.mxu0 0.0
    %1125 = vmatprep.subr.mxu0 0.0
    %1126 = vmatpush1.msra.mxu0 0.0
    %1127 = vmatprep.subr.mxu0 0.0
    %1128 = vmatpush1.msra.mxu0 0.0
    %1129 = vmatprep.subr.mxu0 0.0
    %1130 = vmatpush1.msra.mxu0 0.0
    %1131 = vmatprep.subr.mxu0 0.0
    %1132 = vmatpush1.msra.mxu0 0.0
    %1133 = vmatprep.subr.mxu0 0.0
    %1134 = vmatpush1.msra.mxu0 0.0
    %1135 = vmatprep.mubr.f32.mxu0 0.0
    %1136 = vmatmul.mubr.f32.gmra.mrb[0].mxu0 %v1069
    %v1137 = vpop.f32.mrb[0].mxu0
    %v1138 = vadd.f32 %v1065, %v1137
    %v1139 = vpop.f32.mrb[0].mxu0
    %1140 = vdwg.mxu0
    %v1141 = vmax.f32 %v1138, 0.0
    %v1142 = vld [vmem:[%s11] sm:$0xff]
    %v1143 = vld [vmem:[%s11 + $0x8] sm:$0xff]
    %v1144 = vld [vmem:[%s11 + $0x10] sm:$0xff]
    %v1145 = vld [vmem:[%s11 + $0x18] sm:$0xff]
    %v1146 = vld [vmem:[%s11 + $0x20] sm:$0xff]
    %v1147 = vld [vmem:[%s11 + $0x28] sm:$0xff]
    %v1148 = vld [vmem:[%s11 + $0x30] sm:$0xff]
    %v1149 = vld [vmem:[%s11 + $0x38] sm:$0xff]
    %v1150 = vld [vmem:[%s11 + $0x40] sm:$0xff]
    %v1151 = vld [vmem:[%s11 + $0x48] sm:$0xff]
    %v1152 = vld [vmem:[%s11 + $0x50] sm:$0xf]
    %v1153 = vld [vmem:[%s12] sm:$0x1]
    %v1155 = vlaneseq
    %v1156 = vshrl.u32 %v1155, 7
    %v1157 = vsub.s32 0, %v1156
    %v1158 = vrot.slane %v1153, %v1157
    %vm1160 = vcmask 687104
    %v1162 = vsel %vm1160, %v1141, 0
    %vm1164 = vcmask 1043456
    %v1166 = vsel %vm1164, %v1152, 0
    %1168 = vmatprep.subr.mxu0 0.0
    %1169 = vmatpush1.msra.mxu0 %v1142
    %1170 = vmatprep.subr.mxu0 0.0
    %1171 = vmatpush1.msra.mxu0 %v1143
    %1172 = vmatprep.subr.mxu0 0.0
    %1173 = vmatpush1.msra.mxu0 %v1144
    %1174 = vmatprep.subr.mxu0 0.0
    %1175 = vmatpush1.msra.mxu0 %v1145
    %1176 = vmatprep.subr.mxu0 0.0
    %1177 = vmatpush1.msra.mxu0 %v1146
    %1178 = vmatprep.subr.mxu0 0.0
    %1179 = vmatpush1.msra.mxu0 %v1147
    %1180 = vmatprep.subr.mxu0 0.0
    %1181 = vmatpush1.msra.mxu0 %v1148
    %1182 = vmatprep.subr.mxu0 0.0
    %1183 = vmatpush1.msra.mxu0 %v1149
    %1184 = vmatprep.subr.mxu0 0.0
    %1185 = vmatpush1.msra.mxu0 %v1150
    %1186 = vmatprep.subr.mxu0 0.0
    %1187 = vmatpush1.msra.mxu0 %v1151
    %1188 = vmatprep.subr.mxu0 0.0
    %1189 = vmatpush1.msra.mxu0 %v1166
    %1190 = vmatprep.subr.mxu0 0.0
    %1191 = vmatpush1.msra.mxu0 0.0
    %1192 = vmatprep.subr.mxu0 0.0
    %1193 = vmatpush1.msra.mxu0 0.0
    %1194 = vmatprep.subr.mxu0 0.0
    %1195 = vmatpush1.msra.mxu0 0.0
    %1196 = vmatprep.subr.mxu0 0.0
    %1197 = vmatpush1.msra.mxu0 0.0
    %1198 = vmatprep.subr.mxu0 0.0
    %1199 = vmatpush1.msra.mxu0 0.0
    %1200 = vmatprep.subr.mxu0 0.0
    %1201 = vmatpush1.msra.mxu0 0.0
    %1202 = vmatprep.subr.mxu0 0.0
    %1203 = vmatpush1.msra.mxu0 0.0
    %1204 = vmatprep.subr.mxu0 0.0
    %1205 = vmatpush1.msra.mxu0 0.0
    %1206 = vmatprep.subr.mxu0 0.0
    %1207 = vmatpush1.msra.mxu0 0.0
    %1208 = vmatprep.subr.mxu0 0.0
    %1209 = vmatpush1.msra.mxu0 0.0
    %1210 = vmatprep.subr.mxu0 0.0
    %1211 = vmatpush1.msra.mxu0 0.0
    %1212 = vmatprep.subr.mxu0 0.0
    %1213 = vmatpush1.msra.mxu0 0.0
    %1214 = vmatprep.subr.mxu0 0.0
    %1215 = vmatpush1.msra.mxu0 0.0
    %1216 = vmatprep.subr.mxu0 0.0
    %1217 = vmatpush1.msra.mxu0 0.0
    %1218 = vmatprep.subr.mxu0 0.0
    %1219 = vmatpush1.msra.mxu0 0.0
    %1220 = vmatprep.subr.mxu0 0.0
    %1221 = vmatpush1.msra.mxu0 0.0
    %1222 = vmatprep.subr.mxu0 0.0
    %1223 = vmatpush1.msra.mxu0 0.0
    %1224 = vmatprep.subr.mxu0 0.0
    %1225 = vmatpush1.msra.mxu0 0.0
    %1226 = vmatprep.subr.mxu0 0.0
    %1227 = vmatpush1.msra.mxu0 0.0
    %1228 = vmatprep.subr.mxu0 0.0
    %1229 = vmatpush1.msra.mxu0 0.0
    %1230 = vmatprep.subr.mxu0 0.0
    %1231 = vmatpush1.msra.mxu0 0.0
    %1232 = vmatprep.mubr.f32.mxu0 0.0
    %1233 = vmatmul.mubr.f32.gmra.mrb[0].mxu0 %v1162
    %v1234 = vpop.f32.mrb[0].mxu0
    %v1235 = vadd.f32 %v1158, %v1234
    %v1236 = vpop.f32.mrb[0].mxu0
    %1237 = vdwg.mxu0
    %vm1238 = vcmask 74752
    %1239 = vst.msk [vmem:[#allocation3] sm:$0x3] %vm1238, %v1235
    // Predicated region
    $region54: #{lenet_bn_forward.3} parent=1 // pred_check
      _
    $region55: #{lenet_bn_forward.3} parent=1 // pred_check_branch
      %1241 = sbr.rel (0) target = $region57
    $region56: #{lenet_bn_forward.3} parent=1 // pred_region
      %s1243 = ssub.s32 32, 32
      %1244 = vsyncadd [#allocation4], %s1243
      %s1246 = sshll.u32 [#allocation3], 4
      %s1247 = int_to_ptr.vmem [resolvable:$true] %s1246
      %1249 = dma.vmem_to_hbm [thread:$0]  %s1247, 32, %s13, [#allocation4]
    $region57: #{lenet_bn_forward.3} parent=1 // pred_fallthru
      _
    // Predicated region
    $region58: #{lenet_bn_forward.3} parent=1 // pred_check
      _
    $region59: #{lenet_bn_forward.3} parent=1 // pred_check_branch
      %1251 = sbr.rel (0) target = $region61
    $region60: #{lenet_bn_forward.3} parent=1 // pred_region
      %1252 = dma.done [#allocation4], 32
    $region61: #{lenet_bn_forward.3} parent=1 // pred_fallthru
      _
    %1253 = vsyncpa [#allocation4], 1

</llo_original>
